<compile_context>
chip_gen: v7x
topology: tpu7x:2x2x1
jax: 0.10.0
libtpu: 0.0.40
codegen_flags: <defaults>
</compile_context>

<pallas_src>
import functools

import jax
import jax.numpy as jnp
from jax.experimental import pallas as pl
from jax.experimental.pallas import tpu as pltpu


def _round_up(n, m):
    return -(-n // m) * m


# ----------------------------------------------------------------------------
# Kernel
# ----------------------------------------------------------------------------
def _vae_kernel(
    # batch-tiled inputs
    x_ref, eps_ref,
    # encoder params (bf16, already transposed: (in, out); head padded to 2*LP)
    ew1_ref, ew2_ref, whead_ref,
    # decoder params (bf16; dw1 padded to (LP, h1); dw3 padded to (h0, IP))
    dw1_ref, dw2_ref, dw3_ref,
    # all biases packed into one f32 (1, total) row (128-lane-aligned segments)
    bias_ref,
    # outputs (lane-dense: (TB, IP) and (TB, 2*LP))
    recon_ref, mulv_ref,
    *, dims, offs,
):
    f32 = jnp.float32
    bf16 = jnp.bfloat16
    h0, h1, lp, ip = dims
    o_eb1, o_eb2, o_bh, o_db1, o_db2, o_db3 = offs

    eb1 = bias_ref[:, o_eb1:o_eb1 + h0]
    eb2 = bias_ref[:, o_eb2:o_eb2 + h1]
    bh = bias_ref[:, o_bh:o_bh + 2 * lp]
    db1 = bias_ref[:, o_db1:o_db1 + h1]
    db2 = bias_ref[:, o_db2:o_db2 + h0]
    db3 = bias_ref[:, o_db3:o_db3 + ip]

    x = x_ref[...].astype(bf16)

    # ---------------- Encoder ----------------
    h = jnp.maximum(jnp.dot(x, ew1_ref[...], preferred_element_type=f32) + eb1, 0.0)
    h = jnp.maximum(
        jnp.dot(h.astype(bf16), ew2_ref[...], preferred_element_type=f32) + eb2, 0.0)
    # Fused, lane-padded mu|logvar head: one matmul into (TB, 2*LP).
    mulv = jnp.dot(h.astype(bf16), whead_ref[...], preferred_element_type=f32) + bh
    mu = mulv[:, :lp]        # padded lanes are 0
    logvar = mulv[:, lp:]    # padded lanes are 0 -> std = 1 there

    # ------------- Reparameterize -------------
    std = jnp.exp(0.5 * logvar)
    z = mu + std * eps_ref[...]   # eps padded lanes are 0 -> z padded lanes are 0

    # ---------------- Decoder -----------------
    d = jnp.maximum(
        jnp.dot(z.astype(bf16), dw1_ref[...], preferred_element_type=f32) + db1, 0.0)
    d = jnp.maximum(
        jnp.dot(d.astype(bf16), dw2_ref[...], preferred_element_type=f32) + db2, 0.0)
    logits = jnp.dot(d.astype(bf16), dw3_ref[...], preferred_element_type=f32) + db3
    recon_ref[...] = jax.nn.sigmoid(logits)   # full-lane store (TB, IP)
    mulv_ref[...] = mulv                      # full-lane store (TB, 2*LP)


# ----------------------------------------------------------------------------
# Params
# ----------------------------------------------------------------------------
def init_vae_params(key, input_dim, hidden_dim, latent_dim):
    """Mirror the PyTorch module init: N(0, 0.1) weights, zero biases.

    Weights are stored transposed, shape (in_features, out_features).
    Biases are stored as (1, out_features).
    """
    def linear(k, din, dout):
        w = 0.1 * jax.random.normal(k, (din, dout), dtype=jnp.float32)
        b = jnp.zeros((1, dout), dtype=jnp.float32)
        return w, b

    ks = jax.random.split(key, 7)
    h0, h1 = hidden_dim
    params = {}
    params["ew1"], params["eb1"] = linear(ks[0], input_dim, h0)
    params["ew2"], params["eb2"] = linear(ks[1], h0, h1)
    params["wmu"], params["bmu"] = linear(ks[2], h1, latent_dim)
    params["wlv"], params["blv"] = linear(ks[3], h1, latent_dim)
    params["dw1"], params["db1"] = linear(ks[4], latent_dim, h1)
    params["dw2"], params["db2"] = linear(ks[5], h1, h0)
    params["dw3"], params["db3"] = linear(ks[6], h0, input_dim)
    return params


def _pack_biases(biases):
    """Concatenate (1, d_i) biases into one (1, total) f32 row; each segment
    starts at a 128-lane-aligned offset so in-kernel slices never cross lane
    tiles."""
    segs, offs, off = [], [], 0
    for b in biases:
        d = b.shape[-1]
        pad = (-d) % 128
        offs.append(off)
        segs.append(jnp.pad(b.reshape(1, d).astype(jnp.float32), ((0, 0), (0, pad))))
        off += d + pad
    return jnp.concatenate(segs, axis=1), tuple(offs)


# ----------------------------------------------------------------------------
# Forward
# ----------------------------------------------------------------------------
def vae_forward(x, eps, params, l2_lambda, *, max_batch_tile=512):
    batch, input_dim = x.shape
    h0 = params["ew1"].shape[1]
    h1 = params["ew2"].shape[1]
    latent = params["wmu"].shape[1]
    LP = _round_up(latent, 128)       # lane-padded latent width
    IP = _round_up(input_dim, 128)    # lane-padded recon width

    f32, bf16 = jnp.float32, jnp.bfloat16

    # --- pack / fuse / lane-pad params (cheap, plain JAX, once per call) ---
    # Fused mu|logvar head padded to 2*LP columns (mu at [0:latent],
    # logvar at [LP:LP+latent], zeros elsewhere).
    whead = jnp.zeros((h1, 2 * LP), f32)
    whead = whead.at[:, :latent].set(params["wmu"]).at[:, LP:LP + latent].set(params["wlv"])
    bhead = jnp.zeros((1, 2 * LP), f32)
    bhead = bhead.at[:, :latent].set(params["bmu"]).at[:, LP:LP + latent].set(params["blv"])
    # Decoder first layer padded to LP input rows; final layer padded to IP cols.
    dw1_p = jnp.zeros((LP, h1), f32).at[:latent, :].set(params["dw1"])
    dw3_p = jnp.zeros((h0, IP), f32).at[:, :input_dim].set(params["dw3"])
    db3_p = jnp.zeros((1, IP), f32).at[:, :input_dim].set(params["db3"])

    # bf16 matmul operands (f32 accumulation inside the kernel).
    ew1_b = params["ew1"].astype(bf16)
    ew2_b = params["ew2"].astype(bf16)
    whead_b = whead.astype(bf16)
    dw1_b = dw1_p.astype(bf16)
    dw2_b = params["dw2"].astype(bf16)
    dw3_b = dw3_p.astype(bf16)

    bias_packed, offs = _pack_biases(
        [params["eb1"], params["eb2"], bhead,
         params["db1"], params["db2"], db3_p])

    # --- batch tiling: pad to a multiple of 8; when batch is large ensure
    # >=2 grid steps (v7x dual-TC) and MXU-align larger tiles -----------------
    batch_pad = _round_up(max(batch, 1), 8)
    if batch_pad > 8:
        tb = min(max_batch_tile, _round_up(-(-batch_pad // 2), 8))
        if tb >= 256:
            tb = (tb // 256) * 256
        elif tb >= 128:
            tb = (tb // 128) * 128
    else:
        tb = batch_pad
    batch_pad = _round_up(batch_pad, tb)
    grid = (batch_pad // tb,)

    # Avoid a full-array copy of x when no padding is needed.
    if batch_pad == batch:
        x_p = x
    else:
        x_p = jnp.pad(x, ((0, batch_pad - batch), (0, 0)))
    # eps is tiny; pad rows and lanes (to LP) in one shot.
    eps_p = jnp.pad(eps, ((0, batch_pad - batch), (0, LP - latent)))

    args = (x_p, eps_p, ew1_b, ew2_b, whead_b, dw1_b, dw2_b, dw3_b, bias_packed)

    def make_call(use_buffered):
        def resident(arr):
            # Constant index_map -> weights/biases stay resident across the
            # batch grid; single-buffer them (no point double-buffering).
            if use_buffered:
                return pl.BlockSpec(arr.shape, lambda i: (0, 0),
                                    pipeline_mode=pl.Buffered(1))
            return pl.BlockSpec(arr.shape, lambda i: (0, 0))

        in_specs = [
            pl.BlockSpec((tb, input_dim), lambda i: (i, 0)),   # x
            pl.BlockSpec((tb, LP), lambda i: (i, 0)),          # eps (lane-padded)
            resident(ew1_b), resident(ew2_b), resident(whead_b),
            resident(dw1_b), resident(dw2_b), resident(dw3_b),
            resident(bias_packed),
        ]
        out_specs = (
            pl.BlockSpec((tb, IP), lambda i: (i, 0)),          # recon (padded)
            pl.BlockSpec((tb, 2 * LP), lambda i: (i, 0)),      # mu|logvar (padded)
        )
        out_shapes = (
            jax.ShapeDtypeStruct((batch_pad, IP), jnp.float32),
            jax.ShapeDtypeStruct((batch_pad, 2 * LP), jnp.float32),
        )
        return pl.pallas_call(
            functools.partial(_vae_kernel, dims=(h0, h1, LP, IP), offs=offs),
            grid=grid,
            in_specs=in_specs,
            out_specs=out_specs,
            out_shape=out_shapes,
            compiler_params=pltpu.CompilerParams(
                dimension_semantics=("parallel",),
                vmem_limit_bytes=48 * 1024 * 1024),
        )

    try:
        recon_p, mulv_p = make_call(use_buffered=True)(*args)
    except Exception:
        # Fallback in case this JAX build rejects Buffered(1) on resident refs.
        recon_p, mulv_p = make_call(use_buffered=False)(*args)

    recon = recon_p[:batch, :input_dim]
    mu = mulv_p[:batch, :latent]
    logvar = mulv_p[:batch, LP:LP + latent]

    # Decoder L2 penalty: parameter-only (original f32 params), hoisted out of
    # the kernel.
    l2 = (jnp.sum(params["dw1"] ** 2) + jnp.sum(params["db1"] ** 2)
          + jnp.sum(params["dw2"] ** 2) + jnp.sum(params["db2"] ** 2)
          + jnp.sum(params["dw3"] ** 2) + jnp.sum(params["db3"] ** 2))
    l2_penalty = jnp.float32(l2_lambda) * l2

    return recon, mu, logvar, l2_penalty


if __name__ == "__main__":
    # Small shapes consistent with the module: MLP VAE over flat features.
    batch = 8
    input_dim = 64
    hidden_dim = (32, 16)
    latent_dim = 8
    l2_lambda = 0.01

    key = jax.random.PRNGKey(0)
    k_params, k_x, k_eps = jax.random.split(key, 3)

    params = init_vae_params(k_params, input_dim, hidden_dim, latent_dim)
    x = jax.random.normal(k_x, (batch, input_dim), dtype=jnp.float32)
    eps = jax.random.normal(k_eps, (batch, latent_dim), dtype=jnp.float32)

    recon_x, mu, logvar, l2_penalty = vae_forward(x, eps, params, l2_lambda)
    jax.block_until_ready((recon_x, mu, logvar, l2_penalty))

    assert recon_x.shape == (batch, input_dim)
    assert mu.shape == (batch, latent_dim)
    assert logvar.shape == (batch, latent_dim)
    assert l2_penalty.shape == ()
    assert bool(jnp.all(jnp.isfinite(recon_x)))
    assert bool(jnp.all((recon_x >= 0.0) & (recon_x <= 1.0)))
    assert bool(jnp.all(jnp.isfinite(mu))) and bool(jnp.all(jnp.isfinite(logvar)))

    print("KERNEL_OK")
</pallas_src>

<mosaic_0001>
module attributes {stable_mosaic.version = 11 : i64} {
  func.func @_vae_kernel(%arg0: i32, %arg1: memref<8x64xf32, #tpu.memory_space<vmem>>, %arg2: memref<8x128xf32, #tpu.memory_space<vmem>>, %arg3: memref<64x32xbf16, #tpu.memory_space<vmem>>, %arg4: memref<32x16xbf16, #tpu.memory_space<vmem>>, %arg5: memref<16x256xbf16, #tpu.memory_space<vmem>>, %arg6: memref<128x16xbf16, #tpu.memory_space<vmem>>, %arg7: memref<16x32xbf16, #tpu.memory_space<vmem>>, %arg8: memref<32x128xbf16, #tpu.memory_space<vmem>>, %arg9: memref<1x896xf32, #tpu.memory_space<vmem>>, %arg10: memref<8x128xf32, #tpu.memory_space<vmem>>, %arg11: memref<8x256xf32, #tpu.memory_space<vmem>>) attributes {dimension_semantics = [#tpu.dimension_semantics<parallel>], iteration_bounds = array<i64: 1>, scalar_prefetch = 0 : i64, scratch_operands = 0 : i64, tpu.core_type = #tpu.core_type<tc>, window_params = [{transform_indices = @transform_0, window_bounds = array<i64: 8, 64>}, {transform_indices = @transform_1, window_bounds = array<i64: 8, 128>}, {pipeline_mode = #tpu.pipeline_mode<synchronous>, transform_indices = @transform_2, window_bounds = array<i64: 64, 32>}, {pipeline_mode = #tpu.pipeline_mode<synchronous>, transform_indices = @transform_3, window_bounds = array<i64: 32, 16>}, {pipeline_mode = #tpu.pipeline_mode<synchronous>, transform_indices = @transform_4, window_bounds = array<i64: 16, 256>}, {pipeline_mode = #tpu.pipeline_mode<synchronous>, transform_indices = @transform_5, window_bounds = array<i64: 128, 16>}, {pipeline_mode = #tpu.pipeline_mode<synchronous>, transform_indices = @transform_6, window_bounds = array<i64: 16, 32>}, {pipeline_mode = #tpu.pipeline_mode<synchronous>, transform_indices = @transform_7, window_bounds = array<i64: 32, 128>}, {pipeline_mode = #tpu.pipeline_mode<synchronous>, transform_indices = @transform_8, window_bounds = array<i64: 1, 896>}, {transform_indices = @transform_9, window_bounds = array<i64: 8, 128>}, {transform_indices = @transform_10, window_bounds = array<i64: 8, 256>}]} {
    %c0 = arith.constant 0 : index
    %c0_0 = arith.constant 0 : index
    %0 = vector.load %arg9[%c0, %c0_0] : memref<1x896xf32, #tpu.memory_space<vmem>>, vector<1x32xf32>
    %c0_1 = arith.constant 0 : index
    %c128 = arith.constant 128 : index
    %1 = vector.load %arg9[%c0_1, %c128] : memref<1x896xf32, #tpu.memory_space<vmem>>, vector<1x16xf32>
    %c0_2 = arith.constant 0 : index
    %c256 = arith.constant 256 : index
    %2 = vector.load %arg9[%c0_2, %c256] : memref<1x896xf32, #tpu.memory_space<vmem>>, vector<1x256xf32>
    %c0_3 = arith.constant 0 : index
    %c512 = arith.constant 512 : index
    %3 = vector.load %arg9[%c0_3, %c512] : memref<1x896xf32, #tpu.memory_space<vmem>>, vector<1x16xf32>
    %c0_4 = arith.constant 0 : index
    %c640 = arith.constant 640 : index
    %4 = vector.load %arg9[%c0_4, %c640] : memref<1x896xf32, #tpu.memory_space<vmem>>, vector<1x32xf32>
    %c0_5 = arith.constant 0 : index
    %c768 = arith.constant 768 : index
    %5 = vector.load %arg9[%c0_5, %c768] : memref<1x896xf32, #tpu.memory_space<vmem>>, vector<1x128xf32>
    %c0_6 = arith.constant 0 : index
    %c0_7 = arith.constant 0 : index
    %6 = vector.load %arg1[%c0_6, %c0_7] : memref<8x64xf32, #tpu.memory_space<vmem>>, vector<8x64xf32>
    %7 = arith.truncf %6 : vector<8x64xf32> to vector<8x64xbf16>
    %c0_8 = arith.constant 0 : index
    %c0_9 = arith.constant 0 : index
    %8 = vector.load %arg3[%c0_8, %c0_9] : memref<64x32xbf16, #tpu.memory_space<vmem>>, vector<64x32xbf16>
    %cst = arith.constant dense<0.000000e+00> : vector<8x32xf32>
    %9 = tpu.matmul %7, %8, %cst {dimension_numbers = #tpu.dot_dimension_numbers<[1], [0], [0], [1], [0, 0, 1, 1], [], []>} : vector<8x64xbf16>, vector<64x32xbf16>, vector<8x32xf32> -> vector<8x32xf32>
    %10 = vector.broadcast %0 : vector<1x32xf32> to vector<8x32xf32>
    %11 = arith.addf %9, %10 : vector<8x32xf32>
    %cst_10 = arith.constant 0.000000e+00 : f32
    %12 = vector.broadcast %cst_10 : f32 to vector<8x32xf32>
    %13 = arith.maximumf %11, %12 : vector<8x32xf32>
    %14 = arith.truncf %13 : vector<8x32xf32> to vector<8x32xbf16>
    %c0_11 = arith.constant 0 : index
    %c0_12 = arith.constant 0 : index
    %15 = vector.load %arg4[%c0_11, %c0_12] : memref<32x16xbf16, #tpu.memory_space<vmem>>, vector<32x16xbf16>
    %cst_13 = arith.constant dense<0.000000e+00> : vector<8x16xf32>
    %16 = tpu.matmul %14, %15, %cst_13 {dimension_numbers = #tpu.dot_dimension_numbers<[1], [0], [0], [1], [0, 0, 1, 1], [], []>} : vector<8x32xbf16>, vector<32x16xbf16>, vector<8x16xf32> -> vector<8x16xf32>
    %17 = vector.broadcast %1 : vector<1x16xf32> to vector<8x16xf32>
    %18 = arith.addf %16, %17 : vector<8x16xf32>
    %cst_14 = arith.constant 0.000000e+00 : f32
    %19 = vector.broadcast %cst_14 : f32 to vector<8x16xf32>
    %20 = arith.maximumf %18, %19 : vector<8x16xf32>
    %21 = arith.truncf %20 : vector<8x16xf32> to vector<8x16xbf16>
    %c0_15 = arith.constant 0 : index
    %c0_16 = arith.constant 0 : index
    %22 = vector.load %arg5[%c0_15, %c0_16] : memref<16x256xbf16, #tpu.memory_space<vmem>>, vector<16x256xbf16>
    %cst_17 = arith.constant dense<0.000000e+00> : vector<8x256xf32>
    %23 = tpu.matmul %21, %22, %cst_17 {dimension_numbers = #tpu.dot_dimension_numbers<[1], [0], [0], [1], [0, 0, 1, 1], [], []>} : vector<8x16xbf16>, vector<16x256xbf16>, vector<8x256xf32> -> vector<8x256xf32>
    %24 = vector.broadcast %2 : vector<1x256xf32> to vector<8x256xf32>
    %25 = arith.addf %23, %24 : vector<8x256xf32>
    %26 = vector.extract_strided_slice %25 {offsets = [0, 0], sizes = [8, 128], strides = [1, 1]} : vector<8x256xf32> to vector<8x128xf32>
    %27 = vector.extract_strided_slice %25 {offsets = [0, 128], sizes = [8, 128], strides = [1, 1]} : vector<8x256xf32> to vector<8x128xf32>
    %cst_18 = arith.constant 5.000000e-01 : f32
    %28 = vector.broadcast %cst_18 : f32 to vector<8x128xf32>
    %29 = arith.mulf %28, %27 : vector<8x128xf32>
    %30 = math.exp %29 : vector<8x128xf32>
    %c0_19 = arith.constant 0 : index
    %c0_20 = arith.constant 0 : index
    %31 = vector.load %arg2[%c0_19, %c0_20] : memref<8x128xf32, #tpu.memory_space<vmem>>, vector<8x128xf32>
    %32 = arith.mulf %30, %31 : vector<8x128xf32>
    %33 = arith.addf %26, %32 : vector<8x128xf32>
    %34 = arith.truncf %33 : vector<8x128xf32> to vector<8x128xbf16>
    %c0_21 = arith.constant 0 : index
    %c0_22 = arith.constant 0 : index
    %35 = vector.load %arg6[%c0_21, %c0_22] : memref<128x16xbf16, #tpu.memory_space<vmem>>, vector<128x16xbf16>
    %cst_23 = arith.constant dense<0.000000e+00> : vector<8x16xf32>
    %36 = tpu.matmul %34, %35, %cst_23 {dimension_numbers = #tpu.dot_dimension_numbers<[1], [0], [0], [1], [0, 0, 1, 1], [], []>} : vector<8x128xbf16>, vector<128x16xbf16>, vector<8x16xf32> -> vector<8x16xf32>
    %37 = vector.broadcast %3 : vector<1x16xf32> to vector<8x16xf32>
    %38 = arith.addf %36, %37 : vector<8x16xf32>
    %cst_24 = arith.constant 0.000000e+00 : f32
    %39 = vector.broadcast %cst_24 : f32 to vector<8x16xf32>
    %40 = arith.maximumf %38, %39 : vector<8x16xf32>
    %41 = arith.truncf %40 : vector<8x16xf32> to vector<8x16xbf16>
    %c0_25 = arith.constant 0 : index
    %c0_26 = arith.constant 0 : index
    %42 = vector.load %arg7[%c0_25, %c0_26] : memref<16x32xbf16, #tpu.memory_space<vmem>>, vector<16x32xbf16>
    %cst_27 = arith.constant dense<0.000000e+00> : vector<8x32xf32>
    %43 = tpu.matmul %41, %42, %cst_27 {dimension_numbers = #tpu.dot_dimension_numbers<[1], [0], [0], [1], [0, 0, 1, 1], [], []>} : vector<8x16xbf16>, vector<16x32xbf16>, vector<8x32xf32> -> vector<8x32xf32>
    %44 = vector.broadcast %4 : vector<1x32xf32> to vector<8x32xf32>
    %45 = arith.addf %43, %44 : vector<8x32xf32>
    %cst_28 = arith.constant 0.000000e+00 : f32
    %46 = vector.broadcast %cst_28 : f32 to vector<8x32xf32>
    %47 = arith.maximumf %45, %46 : vector<8x32xf32>
    %48 = arith.truncf %47 : vector<8x32xf32> to vector<8x32xbf16>
    %c0_29 = arith.constant 0 : index
    %c0_30 = arith.constant 0 : index
    %49 = vector.load %arg8[%c0_29, %c0_30] : memref<32x128xbf16, #tpu.memory_space<vmem>>, vector<32x128xbf16>
    %cst_31 = arith.constant dense<0.000000e+00> : vector<8x128xf32>
    %50 = tpu.matmul %48, %49, %cst_31 {dimension_numbers = #tpu.dot_dimension_numbers<[1], [0], [0], [1], [0, 0, 1, 1], [], []>} : vector<8x32xbf16>, vector<32x128xbf16>, vector<8x128xf32> -> vector<8x128xf32>
    %51 = vector.broadcast %5 : vector<1x128xf32> to vector<8x128xf32>
    %52 = arith.addf %50, %51 : vector<8x128xf32>
    %53 = arith.negf %52 : vector<8x128xf32>
    %54 = math.exp %53 : vector<8x128xf32>
    %cst_32 = arith.constant 1.000000e+00 : f32
    %55 = vector.broadcast %cst_32 : f32 to vector<8x128xf32>
    %56 = arith.addf %55, %54 : vector<8x128xf32>
    %57 = arith.divf %55, %56 : vector<8x128xf32>
    %c0_33 = arith.constant 0 : index
    %c0_34 = arith.constant 0 : index
    %58 = vector.load %arg10[%c0_33, %c0_34] : memref<8x128xf32, #tpu.memory_space<vmem>>, vector<8x128xf32>
    tpu.vector_store %arg10[%c0_33, %c0_34], %57 {strides = array<i32>} : memref<8x128xf32, #tpu.memory_space<vmem>>, vector<8x128xf32>,
    %c0_35 = arith.constant 0 : index
    %c0_36 = arith.constant 0 : index
    %59 = vector.load %arg11[%c0_35, %c0_36] : memref<8x256xf32, #tpu.memory_space<vmem>>, vector<8x256xf32>
    tpu.vector_store %arg11[%c0_35, %c0_36], %25 {strides = array<i32>} : memref<8x256xf32, #tpu.memory_space<vmem>>, vector<8x256xf32>,
    return
  }
  func.func @transform_0(%arg0: i32) -> (i32, i32) {
    %c0_i32 = arith.constant 0 : i32
    %c0_i32_0 = arith.constant 0 : i32
    return %arg0, %c0_i32 : i32, i32
  }
  func.func @transform_1(%arg0: i32) -> (i32, i32) {
    %c0_i32 = arith.constant 0 : i32
    %c0_i32_0 = arith.constant 0 : i32
    return %arg0, %c0_i32 : i32, i32
  }
  func.func @transform_2(%arg0: i32) -> (i32, i32) {
    %c0_i32 = arith.constant 0 : i32
    %c0_i32_0 = arith.constant 0 : i32
    %c0_i32_1 = arith.constant 0 : i32
    return %c0_i32, %c0_i32_0 : i32, i32
  }
  func.func @transform_3(%arg0: i32) -> (i32, i32) {
    %c0_i32 = arith.constant 0 : i32
    %c0_i32_0 = arith.constant 0 : i32
    %c0_i32_1 = arith.constant 0 : i32
    return %c0_i32, %c0_i32_0 : i32, i32
  }
  func.func @transform_4(%arg0: i32) -> (i32, i32) {
    %c0_i32 = arith.constant 0 : i32
    %c0_i32_0 = arith.constant 0 : i32
    %c0_i32_1 = arith.constant 0 : i32
    return %c0_i32, %c0_i32_0 : i32, i32
  }
  func.func @transform_5(%arg0: i32) -> (i32, i32) {
    %c0_i32 = arith.constant 0 : i32
    %c0_i32_0 = arith.constant 0 : i32
    %c0_i32_1 = arith.constant 0 : i32
    return %c0_i32, %c0_i32_0 : i32, i32
  }
  func.func @transform_6(%arg0: i32) -> (i32, i32) {
    %c0_i32 = arith.constant 0 : i32
    %c0_i32_0 = arith.constant 0 : i32
    %c0_i32_1 = arith.constant 0 : i32
    return %c0_i32, %c0_i32_0 : i32, i32
  }
  func.func @transform_7(%arg0: i32) -> (i32, i32) {
    %c0_i32 = arith.constant 0 : i32
    %c0_i32_0 = arith.constant 0 : i32
    %c0_i32_1 = arith.constant 0 : i32
    return %c0_i32, %c0_i32_0 : i32, i32
  }
  func.func @transform_8(%arg0: i32) -> (i32, i32) {
    %c0_i32 = arith.constant 0 : i32
    %c0_i32_0 = arith.constant 0 : i32
    %c0_i32_1 = arith.constant 0 : i32
    return %c0_i32, %c0_i32_0 : i32, i32
  }
  func.func @transform_9(%arg0: i32) -> (i32, i32) {
    %c0_i32 = arith.constant 0 : i32
    %c0_i32_0 = arith.constant 0 : i32
    return %arg0, %c0_i32 : i32, i32
  }
  func.func @transform_10(%arg0: i32) -> (i32, i32) {
    %c0_i32 = arith.constant 0 : i32
    %c0_i32_0 = arith.constant 0 : i32
    return %arg0, %c0_i32 : i32, i32
  }
}

module attributes {stable_mosaic.version = 11 : i64} {
  func.func @_vae_kernel(%arg0: i32, %arg1: memref<8x64xf32, #tpu.memory_space<vmem>>, %arg2: memref<8x128xf32, #tpu.memory_space<vmem>>, %arg3: memref<64x32xbf16, #tpu.memory_space<vmem>>, %arg4: memref<32x16xbf16, #tpu.memory_space<vmem>>, %arg5: memref<16x256xbf16, #tpu.memory_space<vmem>>, %arg6: memref<128x16xbf16, #tpu.memory_space<vmem>>, %arg7: memref<16x32xbf16, #tpu.memory_space<vmem>>, %arg8: memref<32x128xbf16, #tpu.memory_space<vmem>>, %arg9: memref<1x896xf32, #tpu.memory_space<vmem>>, %arg10: memref<8x128xf32, #tpu.memory_space<vmem>>, %arg11: memref<8x256xf32, #tpu.memory_space<vmem>>) attributes {dimension_semantics = [#tpu.dimension_semantics<parallel>], iteration_bounds = array<i64: 1>, scalar_prefetch = 0 : i64, scratch_operands = 0 : i64, tpu.core_type = #tpu.core_type<tc>, window_params = [{transform_indices = @transform_0, window_bounds = array<i64: 8, 64>}, {transform_indices = @transform_1, window_bounds = array<i64: 8, 128>}, {pipeline_mode = #tpu.pipeline_mode<synchronous>, transform_indices = @transform_2, window_bounds = array<i64: 64, 32>}, {pipeline_mode = #tpu.pipeline_mode<synchronous>, transform_indices = @transform_3, window_bounds = array<i64: 32, 16>}, {pipeline_mode = #tpu.pipeline_mode<synchronous>, transform_indices = @transform_4, window_bounds = array<i64: 16, 256>}, {pipeline_mode = #tpu.pipeline_mode<synchronous>, transform_indices = @transform_5, window_bounds = array<i64: 128, 16>}, {pipeline_mode = #tpu.pipeline_mode<synchronous>, transform_indices = @transform_6, window_bounds = array<i64: 16, 32>}, {pipeline_mode = #tpu.pipeline_mode<synchronous>, transform_indices = @transform_7, window_bounds = array<i64: 32, 128>}, {pipeline_mode = #tpu.pipeline_mode<synchronous>, transform_indices = @transform_8, window_bounds = array<i64: 1, 896>}, {transform_indices = @transform_9, window_bounds = array<i64: 8, 128>}, {transform_indices = @transform_10, window_bounds = array<i64: 8, 256>}]} {
    %c0 = arith.constant 0 : index
    %c0_0 = arith.constant 0 : index
    %0 = vector.load %arg9[%c0, %c0_0] : memref<1x896xf32, #tpu.memory_space<vmem>>, vector<1x32xf32>
    %c0_1 = arith.constant 0 : index
    %c128 = arith.constant 128 : index
    %1 = vector.load %arg9[%c0_1, %c128] : memref<1x896xf32, #tpu.memory_space<vmem>>, vector<1x16xf32>
    %c0_2 = arith.constant 0 : index
    %c256 = arith.constant 256 : index
    %2 = vector.load %arg9[%c0_2, %c256] : memref<1x896xf32, #tpu.memory_space<vmem>>, vector<1x256xf32>
    %c0_3 = arith.constant 0 : index
    %c512 = arith.constant 512 : index
    %3 = vector.load %arg9[%c0_3, %c512] : memref<1x896xf32, #tpu.memory_space<vmem>>, vector<1x16xf32>
    %c0_4 = arith.constant 0 : index
    %c640 = arith.constant 640 : index
    %4 = vector.load %arg9[%c0_4, %c640] : memref<1x896xf32, #tpu.memory_space<vmem>>, vector<1x32xf32>
    %c0_5 = arith.constant 0 : index
    %c768 = arith.constant 768 : index
    %5 = vector.load %arg9[%c0_5, %c768] : memref<1x896xf32, #tpu.memory_space<vmem>>, vector<1x128xf32>
    %c0_6 = arith.constant 0 : index
    %c0_7 = arith.constant 0 : index
    %6 = vector.load %arg1[%c0_6, %c0_7] : memref<8x64xf32, #tpu.memory_space<vmem>>, vector<8x64xf32>
    %7 = arith.truncf %6 : vector<8x64xf32> to vector<8x64xbf16>
    %c0_8 = arith.constant 0 : index
    %c0_9 = arith.constant 0 : index
    %8 = vector.load %arg3[%c0_8, %c0_9] : memref<64x32xbf16, #tpu.memory_space<vmem>>, vector<64x32xbf16>
    %cst = arith.constant dense<0.000000e+00> : vector<8x32xf32>
    %9 = tpu.matmul %7, %8, %cst {dimension_numbers = #tpu.dot_dimension_numbers<[1], [0], [0], [1], [0, 0, 1, 1], [], []>} : vector<8x64xbf16>, vector<64x32xbf16>, vector<8x32xf32> -> vector<8x32xf32>
    %10 = vector.broadcast %0 : vector<1x32xf32> to vector<8x32xf32>
    %11 = arith.addf %9, %10 : vector<8x32xf32>
    %cst_10 = arith.constant 0.000000e+00 : f32
    %12 = vector.broadcast %cst_10 : f32 to vector<8x32xf32>
    %13 = arith.maximumf %11, %12 : vector<8x32xf32>
    %14 = arith.truncf %13 : vector<8x32xf32> to vector<8x32xbf16>
    %c0_11 = arith.constant 0 : index
    %c0_12 = arith.constant 0 : index
    %15 = vector.load %arg4[%c0_11, %c0_12] : memref<32x16xbf16, #tpu.memory_space<vmem>>, vector<32x16xbf16>
    %cst_13 = arith.constant dense<0.000000e+00> : vector<8x16xf32>
    %16 = tpu.matmul %14, %15, %cst_13 {dimension_numbers = #tpu.dot_dimension_numbers<[1], [0], [0], [1], [0, 0, 1, 1], [], []>} : vector<8x32xbf16>, vector<32x16xbf16>, vector<8x16xf32> -> vector<8x16xf32>
    %17 = vector.broadcast %1 : vector<1x16xf32> to vector<8x16xf32>
    %18 = arith.addf %16, %17 : vector<8x16xf32>
    %cst_14 = arith.constant 0.000000e+00 : f32
    %19 = vector.broadcast %cst_14 : f32 to vector<8x16xf32>
    %20 = arith.maximumf %18, %19 : vector<8x16xf32>
    %21 = arith.truncf %20 : vector<8x16xf32> to vector<8x16xbf16>
    %c0_15 = arith.constant 0 : index
    %c0_16 = arith.constant 0 : index
    %22 = vector.load %arg5[%c0_15, %c0_16] : memref<16x256xbf16, #tpu.memory_space<vmem>>, vector<16x256xbf16>
    %cst_17 = arith.constant dense<0.000000e+00> : vector<8x256xf32>
    %23 = tpu.matmul %21, %22, %cst_17 {dimension_numbers = #tpu.dot_dimension_numbers<[1], [0], [0], [1], [0, 0, 1, 1], [], []>} : vector<8x16xbf16>, vector<16x256xbf16>, vector<8x256xf32> -> vector<8x256xf32>
    %24 = vector.broadcast %2 : vector<1x256xf32> to vector<8x256xf32>
    %25 = arith.addf %23, %24 : vector<8x256xf32>
    %26 = vector.extract_strided_slice %25 {offsets = [0, 0], sizes = [8, 128], strides = [1, 1]} : vector<8x256xf32> to vector<8x128xf32>
    %27 = vector.extract_strided_slice %25 {offsets = [0, 128], sizes = [8, 128], strides = [1, 1]} : vector<8x256xf32> to vector<8x128xf32>
    %cst_18 = arith.constant 5.000000e-01 : f32
    %28 = vector.broadcast %cst_18 : f32 to vector<8x128xf32>
    %29 = arith.mulf %28, %27 : vector<8x128xf32>
    %30 = math.exp %29 : vector<8x128xf32>
    %c0_19 = arith.constant 0 : index
    %c0_20 = arith.constant 0 : index
    %31 = vector.load %arg2[%c0_19, %c0_20] : memref<8x128xf32, #tpu.memory_space<vmem>>, vector<8x128xf32>
    %32 = arith.mulf %30, %31 : vector<8x128xf32>
    %33 = arith.addf %26, %32 : vector<8x128xf32>
    %34 = arith.truncf %33 : vector<8x128xf32> to vector<8x128xbf16>
    %c0_21 = arith.constant 0 : index
    %c0_22 = arith.constant 0 : index
    %35 = vector.load %arg6[%c0_21, %c0_22] : memref<128x16xbf16, #tpu.memory_space<vmem>>, vector<128x16xbf16>
    %cst_23 = arith.constant dense<0.000000e+00> : vector<8x16xf32>
    %36 = tpu.matmul %34, %35, %cst_23 {dimension_numbers = #tpu.dot_dimension_numbers<[1], [0], [0], [1], [0, 0, 1, 1], [], []>} : vector<8x128xbf16>, vector<128x16xbf16>, vector<8x16xf32> -> vector<8x16xf32>
    %37 = vector.broadcast %3 : vector<1x16xf32> to vector<8x16xf32>
    %38 = arith.addf %36, %37 : vector<8x16xf32>
    %cst_24 = arith.constant 0.000000e+00 : f32
    %39 = vector.broadcast %cst_24 : f32 to vector<8x16xf32>
    %40 = arith.maximumf %38, %39 : vector<8x16xf32>
    %41 = arith.truncf %40 : vector<8x16xf32> to vector<8x16xbf16>
    %c0_25 = arith.constant 0 : index
    %c0_26 = arith.constant 0 : index
    %42 = vector.load %arg7[%c0_25, %c0_26] : memref<16x32xbf16, #tpu.memory_space<vmem>>, vector<16x32xbf16>
    %cst_27 = arith.constant dense<0.000000e+00> : vector<8x32xf32>
    %43 = tpu.matmul %41, %42, %cst_27 {dimension_numbers = #tpu.dot_dimension_numbers<[1], [0], [0], [1], [0, 0, 1, 1], [], []>} : vector<8x16xbf16>, vector<16x32xbf16>, vector<8x32xf32> -> vector<8x32xf32>
    %44 = vector.broadcast %4 : vector<1x32xf32> to vector<8x32xf32>
    %45 = arith.addf %43, %44 : vector<8x32xf32>
    %cst_28 = arith.constant 0.000000e+00 : f32
    %46 = vector.broadcast %cst_28 : f32 to vector<8x32xf32>
    %47 = arith.maximumf %45, %46 : vector<8x32xf32>
    %48 = arith.truncf %47 : vector<8x32xf32> to vector<8x32xbf16>
    %c0_29 = arith.constant 0 : index
    %c0_30 = arith.constant 0 : index
    %49 = vector.load %arg8[%c0_29, %c0_30] : memref<32x128xbf16, #tpu.memory_space<vmem>>, vector<32x128xbf16>
    %cst_31 = arith.constant dense<0.000000e+00> : vector<8x128xf32>
    %50 = tpu.matmul %48, %49, %cst_31 {dimension_numbers = #tpu.dot_dimension_numbers<[1], [0], [0], [1], [0, 0, 1, 1], [], []>} : vector<8x32xbf16>, vector<32x128xbf16>, vector<8x128xf32> -> vector<8x128xf32>
    %51 = vector.broadcast %5 : vector<1x128xf32> to vector<8x128xf32>
    %52 = arith.addf %50, %51 : vector<8x128xf32>
    %53 = arith.negf %52 : vector<8x128xf32>
    %54 = math.exp %53 : vector<8x128xf32>
    %cst_32 = arith.constant 1.000000e+00 : f32
    %55 = vector.broadcast %cst_32 : f32 to vector<8x128xf32>
    %56 = arith.addf %55, %54 : vector<8x128xf32>
    %57 = arith.divf %55, %56 : vector<8x128xf32>
    %c0_33 = arith.constant 0 : index
    %c0_34 = arith.constant 0 : index
    %58 = vector.load %arg10[%c0_33, %c0_34] : memref<8x128xf32, #tpu.memory_space<vmem>>, vector<8x128xf32>
    tpu.vector_store %arg10[%c0_33, %c0_34], %57 {strides = array<i32>} : memref<8x128xf32, #tpu.memory_space<vmem>>, vector<8x128xf32>,
    %c0_35 = arith.constant 0 : index
    %c0_36 = arith.constant 0 : index
    %59 = vector.load %arg11[%c0_35, %c0_36] : memref<8x256xf32, #tpu.memory_space<vmem>>, vector<8x256xf32>
    tpu.vector_store %arg11[%c0_35, %c0_36], %25 {strides = array<i32>} : memref<8x256xf32, #tpu.memory_space<vmem>>, vector<8x256xf32>,
    return
  }
  func.func @transform_0(%arg0: i32) -> (i32, i32) {
    %c0_i32 = arith.constant 0 : i32
    %c0_i32_0 = arith.constant 0 : i32
    return %arg0, %c0_i32 : i32, i32
  }
  func.func @transform_1(%arg0: i32) -> (i32, i32) {
    %c0_i32 = arith.constant 0 : i32
    %c0_i32_0 = arith.constant 0 : i32
    return %arg0, %c0_i32 : i32, i32
  }
  func.func @transform_2(%arg0: i32) -> (i32, i32) {
    %c0_i32 = arith.constant 0 : i32
    %c0_i32_0 = arith.constant 0 : i32
    %c0_i32_1 = arith.constant 0 : i32
    return %c0_i32, %c0_i32_0 : i32, i32
  }
  func.func @transform_3(%arg0: i32) -> (i32, i32) {
    %c0_i32 = arith.constant 0 : i32
    %c0_i32_0 = arith.constant 0 : i32
    %c0_i32_1 = arith.constant 0 : i32
    return %c0_i32, %c0_i32_0 : i32, i32
  }
  func.func @transform_4(%arg0: i32) -> (i32, i32) {
    %c0_i32 = arith.constant 0 : i32
    %c0_i32_0 = arith.constant 0 : i32
    %c0_i32_1 = arith.constant 0 : i32
    return %c0_i32, %c0_i32_0 : i32, i32
  }
  func.func @transform_5(%arg0: i32) -> (i32, i32) {
    %c0_i32 = arith.constant 0 : i32
    %c0_i32_0 = arith.constant 0 : i32
    %c0_i32_1 = arith.constant 0 : i32
    return %c0_i32, %c0_i32_0 : i32, i32
  }
  func.func @transform_6(%arg0: i32) -> (i32, i32) {
    %c0_i32 = arith.constant 0 : i32
    %c0_i32_0 = arith.constant 0 : i32
    %c0_i32_1 = arith.constant 0 : i32
    return %c0_i32, %c0_i32_0 : i32, i32
  }
  func.func @transform_7(%arg0: i32) -> (i32, i32) {
    %c0_i32 = arith.constant 0 : i32
    %c0_i32_0 = arith.constant 0 : i32
    %c0_i32_1 = arith.constant 0 : i32
    return %c0_i32, %c0_i32_0 : i32, i32
  }
  func.func @transform_8(%arg0: i32) -> (i32, i32) {
    %c0_i32 = arith.constant 0 : i32
    %c0_i32_0 = arith.constant 0 : i32
    %c0_i32_1 = arith.constant 0 : i32
    return %c0_i32, %c0_i32_0 : i32, i32
  }
  func.func @transform_9(%arg0: i32) -> (i32, i32) {
    %c0_i32 = arith.constant 0 : i32
    %c0_i32_0 = arith.constant 0 : i32
    return %arg0, %c0_i32 : i32, i32
  }
  func.func @transform_10(%arg0: i32) -> (i32, i32) {
    %c0_i32 = arith.constant 0 : i32
    %c0_i32_0 = arith.constant 0 : i32
    return %arg0, %c0_i32 : i32, i32
  }
}

</mosaic_0001>

<llo_original>
// kernel: tpu_custom_call.1
$region0: #{tpu_custom_call.1}
  #allocation0 [shape = 'u32[]', space=smem, size = 0x4, offset = 0x4, fixed_abs, tag = 'smem constant byte address 0x4 - core index']
  #allocation1 [shape = 'u32[144,128]{1,0:T(1,128)}', space=vmem, size = 0x12000, scoped, tag = 'internal scratch']
  %s0 = inlined_call_operand.vmem [shape: f32[8,64], index: 0, kind: input, shape index: {}]
  %s1 = inlined_call_operand.vmem [shape: f32[8,128], index: 1, kind: input, shape index: {}]
  %s2 = inlined_call_operand.vmem [shape: bf16[64,32], index: 2, kind: input, shape index: {}]
  %s3 = inlined_call_operand.vmem [shape: bf16[32,16], index: 3, kind: input, shape index: {}]
  %s4 = inlined_call_operand.vmem [shape: bf16[16,256], index: 4, kind: input, shape index: {}]
  %s5 = inlined_call_operand.vmem [shape: bf16[128,16], index: 5, kind: input, shape index: {}]
  %s6 = inlined_call_operand.vmem [shape: bf16[16,32], index: 6, kind: input, shape index: {}]
  %s7 = inlined_call_operand.vmem [shape: bf16[32,128], index: 7, kind: input, shape index: {}]
  %s8 = inlined_call_operand.vmem [shape: f32[1,896], index: 8, kind: input, shape index: {}]
  %s9 = inlined_call_operand.hbm [shape: f32[8,128], index: 9, kind: output, shape index: {0}]
  %s10 = inlined_call_operand.hbm [shape: f32[8,256], index: 10, kind: output, shape index: {1}]
  %11 = xla_tuple %s9, %s10
  %s12 = sld [smem:[#allocation0]]
  $region54: #{tpu_custom_call.1} parent=0
    _
  %s14 = ssub.s32 1, %s12
  %s15 = scalar_select 0, %s14, %s12
  $region1: #{tpu_custom_call.1} parent=0
    #allocation2 [shape = 'u8[4096]{0}', space=vmem, size = 0x1000, scoped, tag = 'output window, operand 0, single buffered']
    #allocation3 [shape = 's32[1]{0}', space=sflag, size = 0x4, scoped, tag = 'scoped memory for tpu_custom_call.1']
    #allocation4 [shape = 'u8[8192]{0}', space=vmem, size = 0x2000, scoped, tag = 'output window, operand 1, single buffered']
    #allocation5 [shape = 's32[1]{0}', space=sflag, size = 0x4, scoped, tag = 'scoped memory for tpu_custom_call.1']
    %16 = vsyncpa [#allocation3], 0
    %17 = vsyncpa [#allocation5], 0
    // Predicated region
    $region2: #{tpu_custom_call.1} parent=1 // pred_check
      _
    $region3: #{tpu_custom_call.1} parent=1 // pred_check_branch
      %19 = sbr.rel (0) target = $region5
    $region4: #{tpu_custom_call.1} parent=1 // pred_region
      _
    $region5: #{tpu_custom_call.1} parent=1 // pred_fallthru
      _
    // Predicated region
    $region6: #{tpu_custom_call.1} parent=1 // pred_check
      _
    $region7: #{tpu_custom_call.1} parent=1 // pred_check_branch
      %21 = sbr.rel (0) target = $region9
    $region8: #{tpu_custom_call.1} parent=1 // pred_region
      _
    $region9: #{tpu_custom_call.1} parent=1 // pred_fallthru
      _
    // Predicated region
    $region10: #{tpu_custom_call.1} parent=1 // pred_check
      _
    $region11: #{tpu_custom_call.1} parent=1 // pred_check_branch
      %23 = sbr.rel (0) target = $region13
    $region12: #{tpu_custom_call.1} parent=1 // pred_region
      _
    $region13: #{tpu_custom_call.1} parent=1 // pred_fallthru
      _
    // Predicated region
    $region14: #{tpu_custom_call.1} parent=1 // pred_check
      _
    $region15: #{tpu_custom_call.1} parent=1 // pred_check_branch
      %25 = sbr.rel (0) target = $region17
    $region16: #{tpu_custom_call.1} parent=1 // pred_region
      _
    $region17: #{tpu_custom_call.1} parent=1 // pred_fallthru
      _
    // Predicated region
    $region18: #{tpu_custom_call.1} parent=1 // pred_check
      _
    $region19: #{tpu_custom_call.1} parent=1 // pred_check_branch
      %27 = sbr.rel (0) target = $region21
    $region20: #{tpu_custom_call.1} parent=1 // pred_region
      _
    $region21: #{tpu_custom_call.1} parent=1 // pred_fallthru
      _
    // Predicated region
    $region22: #{tpu_custom_call.1} parent=1 // pred_check
      _
    $region23: #{tpu_custom_call.1} parent=1 // pred_check_branch
      %29 = sbr.rel (0) target = $region25
    $region24: #{tpu_custom_call.1} parent=1 // pred_region
      _
    $region25: #{tpu_custom_call.1} parent=1 // pred_fallthru
      _
    // Predicated region
    $region26: #{tpu_custom_call.1} parent=1 // pred_check
      _
    $region27: #{tpu_custom_call.1} parent=1 // pred_check_branch
      %31 = sbr.rel (0) target = $region29
    $region28: #{tpu_custom_call.1} parent=1 // pred_region
      _
    $region29: #{tpu_custom_call.1} parent=1 // pred_fallthru
      _
    // Predicated region
    $region30: #{tpu_custom_call.1} parent=1 // pred_check
      _
    $region31: #{tpu_custom_call.1} parent=1 // pred_check_branch
      %33 = sbr.rel (0) target = $region33
    $region32: #{tpu_custom_call.1} parent=1 // pred_region
      _
    $region33: #{tpu_custom_call.1} parent=1 // pred_fallthru
      _
    // Predicated region
    $region34: #{tpu_custom_call.1} parent=1 // pred_check
      _
    $region35: #{tpu_custom_call.1} parent=1 // pred_check_branch
      %35 = sbr.rel (0) target = $region37
    $region36: #{tpu_custom_call.1} parent=1 // pred_region
      _
    $region37: #{tpu_custom_call.1} parent=1 // pred_fallthru
      _
    %v37 = vld [vmem:[%s8] sm:$0x1]
    %v38 = vld [vmem:[%s8 + $0x1] sm:$0x1]
    %v39 = vld [vmem:[%s8 + $0x2] sm:$0x3]
    %v40 = vld [vmem:[%s8 + $0x4] sm:$0x1]
    %v41 = vld [vmem:[%s8 + $0x5] sm:$0x1]
    %v42 = vld [vmem:[%s8 + $0x6] sm:$0x1]
    %v43 = vld [vmem:[%s0] sm:$0xff]
    %v44 = vpack.c.bf16 %v43, %v43
    %v45 = vld [vmem:[%s2] sm:$0xf]
    %v46 = vld [vmem:[%s2 + $0x4] sm:$0xf]
    %v47 = vld [vmem:[%s2 + $0x8] sm:$0xf]
    %v48 = vld [vmem:[%s2 + $0xc] sm:$0xf]
    %v49 = vld [vmem:[%s2 + $0x10] sm:$0xf]
    %v50 = vld [vmem:[%s2 + $0x14] sm:$0xf]
    %v51 = vld [vmem:[%s2 + $0x18] sm:$0xf]
    %v52 = vld [vmem:[%s2 + $0x1c] sm:$0xf]
    %v54 = vlaneseq
    %v55 = vshrl.u32 %v54, 7
    %v56 = vsub.s32 0, %v55
    %v57 = vrot.slane %v37, %v56
    %v67 = vunpack.c.l.b16 %v45
    %v68 = vunpack.c.l.b16 %v46
    %v69 = vunpack.c.l.b16 %v47
    %v70 = vunpack.c.l.b16 %v48
    %v71 = vunpack.c.l.b16 %v49
    %v72 = vunpack.c.l.b16 %v50
    %v73 = vunpack.c.l.b16 %v51
    %v74 = vunpack.c.l.b16 %v52
    %v75 = vpack.c.b16 %v68, %v67
    %v76 = vpack.c.b16 %v70, %v69
    %v77 = vpack.c.b16 %v72, %v71
    %v78 = vpack.c.b16 %v74, %v73
    %vm83 = vcmask 523264
    %v85 = vsel %vm83, %v44, 0
    %87 = vmatprep.subr.bf16.mxu0 0
    %88 = vmatpush1.bf16.msra.mxu0 %v75
    %89 = vmatprep.subr.bf16.mxu0 0
    %90 = vmatpush1.bf16.msra.mxu0 %v76
    %91 = vmatprep.subr.bf16.mxu0 0
    %92 = vmatpush1.bf16.msra.mxu0 %v77
    %93 = vmatprep.subr.bf16.mxu0 0
    %94 = vmatpush1.bf16.msra.mxu0 %v78
    %95 = vmatprep.subr.bf16.mxu0 0
    %96 = vmatpush1.bf16.msra.mxu0 0
    %97 = vmatprep.subr.bf16.mxu0 0
    %98 = vmatpush1.bf16.msra.mxu0 0
    %99 = vmatprep.subr.bf16.mxu0 0
    %100 = vmatpush1.bf16.msra.mxu0 0
    %101 = vmatprep.subr.bf16.mxu0 0
    %102 = vmatpush1.bf16.msra.mxu0 0
    %103 = vmatprep.subr.bf16.mxu0 0
    %104 = vmatpush1.bf16.msra.mxu0 0
    %105 = vmatprep.subr.bf16.mxu0 0
    %106 = vmatpush1.bf16.msra.mxu0 0
    %107 = vmatprep.subr.bf16.mxu0 0
    %108 = vmatpush1.bf16.msra.mxu0 0
    %109 = vmatprep.subr.bf16.mxu0 0
    %110 = vmatpush1.bf16.msra.mxu0 0
    %111 = vmatprep.subr.bf16.mxu0 0
    %112 = vmatpush1.bf16.msra.mxu0 0
    %113 = vmatprep.subr.bf16.mxu0 0
    %114 = vmatpush1.bf16.msra.mxu0 0
    %115 = vmatprep.subr.bf16.mxu0 0
    %116 = vmatpush1.bf16.msra.mxu0 0
    %117 = vmatprep.subr.bf16.mxu0 0
    %118 = vmatpush1.bf16.msra.mxu0 0
    %119 = vmatprep.mubr.bf16.mxu0 0
    %120 = vmatmul.mubr.bf16.gmra.mrb[0].mxu0 %v85
    %v121 = vpop.f32.mrb[0].mxu0
    %v122 = vadd.f32 %v57, %v121
    %v123 = vpop.f32.mrb[0].mxu0
    %v124 = vpop.f32.mrb[0].mxu0
    %v125 = vpop.f32.mrb[0].mxu0
    %126 = vdwg.mxu0
    %v127 = vmax.f32 %v122, 0.0
    %v128 = vpack.c.bf16 %v127, %v127
    %v129 = vld [vmem:[%s3] sm:$0xf]
    %v130 = vld [vmem:[%s3 + $0x4] sm:$0xf]
    %v131 = vld [vmem:[%s3 + $0x8] sm:$0xf]
    %v132 = vld [vmem:[%s3 + $0xc] sm:$0xf]
    %v134 = vlaneseq
    %v135 = vshrl.u32 %v134, 7
    %v136 = vsub.s32 0, %v135
    %v137 = vrot.slane %v38, %v136
    %v143 = vunpack.c.l.b16 %v129
    %v144 = vunpack.c.l.b16 %v130
    %v145 = vunpack.c.l.b16 %v131
    %v146 = vunpack.c.l.b16 %v132
    %v147 = vpack.c.b16 %v144, %v143
    %v148 = vpack.c.b16 %v146, %v145
    %vm151 = vcmask 261120
    %v153 = vsel %vm151, %v128, 0
    %155 = vmatprep.subr.bf16.mxu0 0
    %156 = vmatpush1.bf16.msra.mxu0 %v147
    %157 = vmatprep.subr.bf16.mxu0 0
    %158 = vmatpush1.bf16.msra.mxu0 %v148
    %159 = vmatprep.subr.bf16.mxu0 0
    %160 = vmatpush1.bf16.msra.mxu0 0
    %161 = vmatprep.subr.bf16.mxu0 0
    %162 = vmatpush1.bf16.msra.mxu0 0
    %163 = vmatprep.subr.bf16.mxu0 0
    %164 = vmatpush1.bf16.msra.mxu0 0
    %165 = vmatprep.subr.bf16.mxu0 0
    %166 = vmatpush1.bf16.msra.mxu0 0
    %167 = vmatprep.subr.bf16.mxu0 0
    %168 = vmatpush1.bf16.msra.mxu0 0
    %169 = vmatprep.subr.bf16.mxu0 0
    %170 = vmatpush1.bf16.msra.mxu0 0
    %171 = vmatprep.subr.bf16.mxu0 0
    %172 = vmatpush1.bf16.msra.mxu0 0
    %173 = vmatprep.subr.bf16.mxu0 0
    %174 = vmatpush1.bf16.msra.mxu0 0
    %175 = vmatprep.subr.bf16.mxu0 0
    %176 = vmatpush1.bf16.msra.mxu0 0
    %177 = vmatprep.subr.bf16.mxu0 0
    %178 = vmatpush1.bf16.msra.mxu0 0
    %179 = vmatprep.subr.bf16.mxu0 0
    %180 = vmatpush1.bf16.msra.mxu0 0
    %181 = vmatprep.subr.bf16.mxu0 0
    %182 = vmatpush1.bf16.msra.mxu0 0
    %183 = vmatprep.subr.bf16.mxu0 0
    %184 = vmatpush1.bf16.msra.mxu0 0
    %185 = vmatprep.subr.bf16.mxu0 0
    %186 = vmatpush1.bf16.msra.mxu0 0
    %187 = vmatprep.mubr.bf16.mxu0 0
    %188 = vmatmul.mubr.bf16.gmra.mrb[0].mxu0 %v153
    %v189 = vpop.f32.mrb[0].mxu0
    %v190 = vadd.f32 %v137, %v189
    %v191 = vpop.f32.mrb[0].mxu0
    %v192 = vpop.f32.mrb[0].mxu0
    %v193 = vpop.f32.mrb[0].mxu0
    %194 = vdwg.mxu0
    %v195 = vmax.f32 %v190, 0.0
    %v196 = vpack.c.bf16 %v195, %v195
    %v197 = vld [vmem:[%s4] sm:$0xff]
    %v198 = vld [vmem:[%s4 + $0x8] sm:$0xff]
    %v200 = vlaneseq
    %v201 = vshrl.u32 %v200, 7
    %v202 = vsub.s32 0, %v201
    %v203 = vrot.slane %v39, %v202
    %v204 = vlaneseq
    %v205 = vshrl.u32 %v204, 7
    %v206 = vsub.s32 1, %v205
    %v207 = vrot.slane %v39, %v206
    %v212 = vunpack.c.l.b16 %v197
    %v213 = vunpack.c.h.b16 %v197
    %v214 = vunpack.c.l.b16 %v198
    %v215 = vunpack.c.h.b16 %v198
    %v216 = vpack.c.b16 %v214, %v212
    %v217 = vpack.c.b16 %v215, %v213
    %vm220 = vcmask 130048
    %v222 = vsel %vm220, %v196, 0
    %224 = vmatprep.subr.bf16.mxu0 %v217
    %225 = vmatpush1.bf16.msra.mxu0 %v216
    %226 = vmatprep.subr.bf16.mxu0 0
    %227 = vmatpush1.bf16.msra.mxu0 0
    %228 = vmatprep.subr.bf16.mxu0 0
    %229 = vmatpush1.bf16.msra.mxu0 0
    %230 = vmatprep.subr.bf16.mxu0 0
    %231 = vmatpush1.bf16.msra.mxu0 0
    %232 = vmatprep.subr.bf16.mxu0 0
    %233 = vmatpush1.bf16.msra.mxu0 0
    %234 = vmatprep.subr.bf16.mxu0 0
    %235 = vmatpush1.bf16.msra.mxu0 0
    %236 = vmatprep.subr.bf16.mxu0 0
    %237 = vmatpush1.bf16.msra.mxu0 0
    %238 = vmatprep.subr.bf16.mxu0 0
    %239 = vmatpush1.bf16.msra.mxu0 0
    %240 = vmatprep.subr.bf16.mxu0 0
    %241 = vmatpush1.bf16.msra.mxu0 0
    %242 = vmatprep.subr.bf16.mxu0 0
    %243 = vmatpush1.bf16.msra.mxu0 0
    %244 = vmatprep.subr.bf16.mxu0 0
    %245 = vmatpush1.bf16.msra.mxu0 0
    %246 = vmatprep.subr.bf16.mxu0 0
    %247 = vmatpush1.bf16.msra.mxu0 0
    %248 = vmatprep.subr.bf16.mxu0 0
    %249 = vmatpush1.bf16.msra.mxu0 0
    %250 = vmatprep.subr.bf16.mxu0 0
    %251 = vmatpush1.bf16.msra.mxu0 0
    %252 = vmatprep.subr.bf16.mxu0 0
    %253 = vmatpush1.bf16.msra.mxu0 0
    %254 = vmatprep.subr.bf16.mxu0 0
    %255 = vmatpush1.bf16.msra.mxu0 0
    %256 = vmatprep.mubr.bf16.mxu0 0
    %257 = vmatmul.mubr.bf16.gmra.mrb[0].mxu0 %v222
    %v258 = vpop.f32.mrb[0].mxu0
    %v259 = vadd.f32 %v203, %v258
    %v260 = vpop.f32.mrb[0].mxu0
    %v261 = vadd.f32 %v207, %v260
    %v262 = vpop.f32.mrb[0].mxu0
    %v263 = vpop.f32.mrb[0].mxu0
    %264 = vdwg.mxu0
    %v265 = vmul.f32 %v261, 0.5
    %v266 = vmul.f32 %v265, 1.442695
    %v267 = vpow.pop %v266
    %v268 = vld [vmem:[%s1] sm:$0xff]
    %v269 = vmul.f32 %v267, %v268
    %v270 = vadd.f32 %v259, %v269
    %v271 = vpack.c.bf16 %v270, %v270
    %v272 = vld [vmem:[%s5] sm:$0xf]
    %v273 = vld [vmem:[%s5 + $0x4] sm:$0xf]
    %v274 = vld [vmem:[%s5 + $0x8] sm:$0xf]
    %v275 = vld [vmem:[%s5 + $0xc] sm:$0xf]
    %v276 = vld [vmem:[%s5 + $0x10] sm:$0xf]
    %v277 = vld [vmem:[%s5 + $0x14] sm:$0xf]
    %v278 = vld [vmem:[%s5 + $0x18] sm:$0xf]
    %v279 = vld [vmem:[%s5 + $0x1c] sm:$0xf]
    %v280 = vld [vmem:[%s5 + $0x20] sm:$0xf]
    %v281 = vld [vmem:[%s5 + $0x24] sm:$0xf]
    %v282 = vld [vmem:[%s5 + $0x28] sm:$0xf]
    %v283 = vld [vmem:[%s5 + $0x2c] sm:$0xf]
    %v284 = vld [vmem:[%s5 + $0x30] sm:$0xf]
    %v285 = vld [vmem:[%s5 + $0x34] sm:$0xf]
    %v286 = vld [vmem:[%s5 + $0x38] sm:$0xf]
    %v287 = vld [vmem:[%s5 + $0x3c] sm:$0xf]
    %v289 = vlaneseq
    %v290 = vshrl.u32 %v289, 7
    %v291 = vsub.s32 0, %v290
    %v292 = vrot.slane %v40, %v291
    %v310 = vunpack.c.l.b16 %v272
    %v311 = vunpack.c.l.b16 %v273
    %v312 = vunpack.c.l.b16 %v274
    %v313 = vunpack.c.l.b16 %v275
    %v314 = vunpack.c.l.b16 %v276
    %v315 = vunpack.c.l.b16 %v277
    %v316 = vunpack.c.l.b16 %v278
    %v317 = vunpack.c.l.b16 %v279
    %v318 = vunpack.c.l.b16 %v280
    %v319 = vunpack.c.l.b16 %v281
    %v320 = vunpack.c.l.b16 %v282
    %v321 = vunpack.c.l.b16 %v283
    %v322 = vunpack.c.l.b16 %v284
    %v323 = vunpack.c.l.b16 %v285
    %v324 = vunpack.c.l.b16 %v286
    %v325 = vunpack.c.l.b16 %v287
    %v326 = vpack.c.b16 %v311, %v310
    %v327 = vpack.c.b16 %v313, %v312
    %v328 = vpack.c.b16 %v315, %v314
    %v329 = vpack.c.b16 %v317, %v316
    %v330 = vpack.c.b16 %v319, %v318
    %v331 = vpack.c.b16 %v321, %v320
    %v332 = vpack.c.b16 %v323, %v322
    %v333 = vpack.c.b16 %v325, %v324
    %342 = vmatprep.subr.bf16.mxu0 0
    %343 = vmatpush1.bf16.msra.mxu0 %v326
    %344 = vmatprep.subr.bf16.mxu0 0
    %345 = vmatpush1.bf16.msra.mxu0 %v327
    %346 = vmatprep.subr.bf16.mxu0 0
    %347 = vmatpush1.bf16.msra.mxu0 %v328
    %348 = vmatprep.subr.bf16.mxu0 0
    %349 = vmatpush1.bf16.msra.mxu0 %v329
    %350 = vmatprep.subr.bf16.mxu0 0
    %351 = vmatpush1.bf16.msra.mxu0 %v330
    %352 = vmatprep.subr.bf16.mxu0 0
    %353 = vmatpush1.bf16.msra.mxu0 %v331
    %354 = vmatprep.subr.bf16.mxu0 0
    %355 = vmatpush1.bf16.msra.mxu0 %v332
    %356 = vmatprep.subr.bf16.mxu0 0
    %357 = vmatpush1.bf16.msra.mxu0 %v333
    %358 = vmatprep.subr.bf16.mxu0 0
    %359 = vmatpush1.bf16.msra.mxu0 0
    %360 = vmatprep.subr.bf16.mxu0 0
    %361 = vmatpush1.bf16.msra.mxu0 0
    %362 = vmatprep.subr.bf16.mxu0 0
    %363 = vmatpush1.bf16.msra.mxu0 0
    %364 = vmatprep.subr.bf16.mxu0 0
    %365 = vmatpush1.bf16.msra.mxu0 0
    %366 = vmatprep.subr.bf16.mxu0 0
    %367 = vmatpush1.bf16.msra.mxu0 0
    %368 = vmatprep.subr.bf16.mxu0 0
    %369 = vmatpush1.bf16.msra.mxu0 0
    %370 = vmatprep.subr.bf16.mxu0 0
    %371 = vmatpush1.bf16.msra.mxu0 0
    %372 = vmatprep.subr.bf16.mxu0 0
    %373 = vmatpush1.bf16.msra.mxu0 0
    %374 = vmatprep.mubr.bf16.mxu0 0
    %375 = vmatmul.mubr.bf16.gmra.mrb[0].mxu0 %v271
    %v376 = vpop.f32.mrb[0].mxu0
    %v377 = vadd.f32 %v292, %v376
    %v378 = vpop.f32.mrb[0].mxu0
    %v379 = vpop.f32.mrb[0].mxu0
    %v380 = vpop.f32.mrb[0].mxu0
    %381 = vdwg.mxu0
    %v382 = vmax.f32 %v377, 0.0
    %v383 = vpack.c.bf16 %v382, %v382
    %v384 = vld [vmem:[%s6] sm:$0xf]
    %v385 = vld [vmem:[%s6 + $0x4] sm:$0xf]
    %v387 = vlaneseq
    %v388 = vshrl.u32 %v387, 7
    %v389 = vsub.s32 0, %v388
    %v390 = vrot.slane %v41, %v389
    %v394 = vunpack.c.l.b16 %v384
    %v395 = vunpack.c.l.b16 %v385
    %v396 = vpack.c.b16 %v395, %v394
    %v399 = vsel %vm220, %v383, 0
    %401 = vmatprep.subr.bf16.mxu0 0
    %402 = vmatpush1.bf16.msra.mxu0 %v396
    %403 = vmatprep.subr.bf16.mxu0 0
    %404 = vmatpush1.bf16.msra.mxu0 0
    %405 = vmatprep.subr.bf16.mxu0 0
    %406 = vmatpush1.bf16.msra.mxu0 0
    %407 = vmatprep.subr.bf16.mxu0 0
    %408 = vmatpush1.bf16.msra.mxu0 0
    %409 = vmatprep.subr.bf16.mxu0 0
    %410 = vmatpush1.bf16.msra.mxu0 0
    %411 = vmatprep.subr.bf16.mxu0 0
    %412 = vmatpush1.bf16.msra.mxu0 0
    %413 = vmatprep.subr.bf16.mxu0 0
    %414 = vmatpush1.bf16.msra.mxu0 0
    %415 = vmatprep.subr.bf16.mxu0 0
    %416 = vmatpush1.bf16.msra.mxu0 0
    %417 = vmatprep.subr.bf16.mxu0 0
    %418 = vmatpush1.bf16.msra.mxu0 0
    %419 = vmatprep.subr.bf16.mxu0 0
    %420 = vmatpush1.bf16.msra.mxu0 0
    %421 = vmatprep.subr.bf16.mxu0 0
    %422 = vmatpush1.bf16.msra.mxu0 0
    %423 = vmatprep.subr.bf16.mxu0 0
    %424 = vmatpush1.bf16.msra.mxu0 0
    %425 = vmatprep.subr.bf16.mxu0 0
    %426 = vmatpush1.bf16.msra.mxu0 0
    %427 = vmatprep.subr.bf16.mxu0 0
    %428 = vmatpush1.bf16.msra.mxu0 0
    %429 = vmatprep.subr.bf16.mxu0 0
    %430 = vmatpush1.bf16.msra.mxu0 0
    %431 = vmatprep.subr.bf16.mxu0 0
    %432 = vmatpush1.bf16.msra.mxu0 0
    %433 = vmatprep.mubr.bf16.mxu0 0
    %434 = vmatmul.mubr.bf16.gmra.mrb[0].mxu0 %v399
    %v435 = vpop.f32.mrb[0].mxu0
    %v436 = vadd.f32 %v390, %v435
    %v437 = vpop.f32.mrb[0].mxu0
    %v438 = vpop.f32.mrb[0].mxu0
    %v439 = vpop.f32.mrb[0].mxu0
    %440 = vdwg.mxu0
    %v441 = vmax.f32 %v436, 0.0
    %v442 = vpack.c.bf16 %v441, %v441
    %v443 = vld [vmem:[%s7] sm:$0xf]
    %v444 = vld [vmem:[%s7 + $0x4] sm:$0xf]
    %v445 = vld [vmem:[%s7 + $0x8] sm:$0xf]
    %v446 = vld [vmem:[%s7 + $0xc] sm:$0xf]
    %v448 = vlaneseq
    %v449 = vshrl.u32 %v448, 7
    %v450 = vsub.s32 0, %v449
    %v451 = vrot.slane %v42, %v450
    %v457 = vunpack.c.l.b16 %v443
    %v458 = vunpack.c.l.b16 %v444
    %v459 = vunpack.c.l.b16 %v445
    %v460 = vunpack.c.l.b16 %v446
    %v461 = vpack.c.b16 %v458, %v457
    %v462 = vpack.c.b16 %v460, %v459
    %v466 = vsel %vm151, %v442, 0
    %468 = vmatprep.subr.bf16.mxu0 0
    %469 = vmatpush1.bf16.msra.mxu0 %v461
    %470 = vmatprep.subr.bf16.mxu0 0
    %471 = vmatpush1.bf16.msra.mxu0 %v462
    %472 = vmatprep.subr.bf16.mxu0 0
    %473 = vmatpush1.bf16.msra.mxu0 0
    %474 = vmatprep.subr.bf16.mxu0 0
    %475 = vmatpush1.bf16.msra.mxu0 0
    %476 = vmatprep.subr.bf16.mxu0 0
    %477 = vmatpush1.bf16.msra.mxu0 0
    %478 = vmatprep.subr.bf16.mxu0 0
    %479 = vmatpush1.bf16.msra.mxu0 0
    %480 = vmatprep.subr.bf16.mxu0 0
    %481 = vmatpush1.bf16.msra.mxu0 0
    %482 = vmatprep.subr.bf16.mxu0 0
    %483 = vmatpush1.bf16.msra.mxu0 0
    %484 = vmatprep.subr.bf16.mxu0 0
    %485 = vmatpush1.bf16.msra.mxu0 0
    %486 = vmatprep.subr.bf16.mxu0 0
    %487 = vmatpush1.bf16.msra.mxu0 0
    %488 = vmatprep.subr.bf16.mxu0 0
    %489 = vmatpush1.bf16.msra.mxu0 0
    %490 = vmatprep.subr.bf16.mxu0 0
    %491 = vmatpush1.bf16.msra.mxu0 0
    %492 = vmatprep.subr.bf16.mxu0 0
    %493 = vmatpush1.bf16.msra.mxu0 0
    %494 = vmatprep.subr.bf16.mxu0 0
    %495 = vmatpush1.bf16.msra.mxu0 0
    %496 = vmatprep.subr.bf16.mxu0 0
    %497 = vmatpush1.bf16.msra.mxu0 0
    %498 = vmatprep.subr.bf16.mxu0 0
    %499 = vmatpush1.bf16.msra.mxu0 0
    %500 = vmatprep.mubr.bf16.mxu0 0
    %501 = vmatmul.mubr.bf16.gmra.mrb[0].mxu0 %v466
    %v502 = vpop.f32.mrb[0].mxu0
    %v503 = vadd.f32 %v451, %v502
    %v504 = vpop.f32.mrb[0].mxu0
    %v505 = vpop.f32.mrb[0].mxu0
    %v506 = vpop.f32.mrb[0].mxu0
    %507 = vdwg.mxu0
    %v508 = vxor.u32 %v503, 2147483648
    %v509 = vmul.f32 %v508, 1.442695
    %v510 = vpow.pop %v509
    %v511 = vadd.f32 %v510, 1.0
    %v512 = vrcp.pop %v511
    %v513 = vmul.f32 1.0, %v512
    %514 = vst [vmem:[#allocation2] sm:$0xff] %v513
    %515 = vst [vmem:[#allocation4] sm:$0xff] %v259
    %516 = vst [vmem:[#allocation4 + $0x8] sm:$0xff] %v261
    // Predicated region
    $region38: #{tpu_custom_call.1} parent=1 // pred_check
      _
    $region39: #{tpu_custom_call.1} parent=1 // pred_check_branch
      %518 = sbr.rel (0) target = $region41
    $region40: #{tpu_custom_call.1} parent=1 // pred_region
      %s520 = ssub.s32 128, 128
      %521 = vsyncadd [#allocation3], %s520
      %s523 = sshll.u32 [#allocation2], 4
      %s524 = int_to_ptr.vmem [resolvable:$true] %s523
      %526 = dma.vmem_to_hbm [thread:$0]  %s524, 128, %s9, [#allocation3]
    $region41: #{tpu_custom_call.1} parent=1 // pred_fallthru
      _
    // Predicated region
    $region42: #{tpu_custom_call.1} parent=1 // pred_check
      _
    $region43: #{tpu_custom_call.1} parent=1 // pred_check_branch
      %528 = sbr.rel (0) target = $region45
    $region44: #{tpu_custom_call.1} parent=1 // pred_region
      %s530 = ssub.s32 256, 256
      %531 = vsyncadd [#allocation5], %s530
      %s533 = sshll.u32 [#allocation4], 4
      %s534 = int_to_ptr.vmem [resolvable:$true] %s533
      %536 = dma.vmem_to_hbm [thread:$0]  %s534, 256, %s10, [#allocation5]
    $region45: #{tpu_custom_call.1} parent=1 // pred_fallthru
      _
    // Predicated region
    $region46: #{tpu_custom_call.1} parent=1 // pred_check
      _
    $region47: #{tpu_custom_call.1} parent=1 // pred_check_branch
      %538 = sbr.rel (0) target = $region49
    $region48: #{tpu_custom_call.1} parent=1 // pred_region
      %539 = dma.done [#allocation3], 128
    $region49: #{tpu_custom_call.1} parent=1 // pred_fallthru
      _
    // Predicated region
    $region50: #{tpu_custom_call.1} parent=1 // pred_check
      _
    $region51: #{tpu_custom_call.1} parent=1 // pred_check_branch
      %541 = sbr.rel (0) target = $region53
    $region52: #{tpu_custom_call.1} parent=1 // pred_region
      %542 = dma.done [#allocation5], 256
    $region53: #{tpu_custom_call.1} parent=1 // pred_fallthru
      _
    %543 = vsyncpa [#allocation3], 1
    %544 = vsyncpa [#allocation5], 1

// kernel: tpu_custom_call.1
$region0: #{tpu_custom_call.1}
  #allocation0 [shape = 'u32[]', space=smem, size = 0x4, offset = 0x4, fixed_abs, tag = 'smem constant byte address 0x4 - core index']
  #allocation1 [shape = 'u32[144,128]{1,0:T(1,128)}', space=vmem, size = 0x12000, scoped, tag = 'internal scratch']
  %s0 = inlined_call_operand.vmem [shape: f32[8,64], index: 0, kind: input, shape index: {}]
  %s1 = inlined_call_operand.vmem [shape: f32[8,128], index: 1, kind: input, shape index: {}]
  %s2 = inlined_call_operand.vmem [shape: bf16[64,32], index: 2, kind: input, shape index: {}]
  %s3 = inlined_call_operand.vmem [shape: bf16[32,16], index: 3, kind: input, shape index: {}]
  %s4 = inlined_call_operand.vmem [shape: bf16[16,256], index: 4, kind: input, shape index: {}]
  %s5 = inlined_call_operand.vmem [shape: bf16[128,16], index: 5, kind: input, shape index: {}]
  %s6 = inlined_call_operand.vmem [shape: bf16[16,32], index: 6, kind: input, shape index: {}]
  %s7 = inlined_call_operand.vmem [shape: bf16[32,128], index: 7, kind: input, shape index: {}]
  %s8 = inlined_call_operand.vmem [shape: f32[1,896], index: 8, kind: input, shape index: {}]
  %s9 = inlined_call_operand.hbm [shape: f32[8,128], index: 9, kind: output, shape index: {0}]
  %s10 = inlined_call_operand.hbm [shape: f32[8,256], index: 10, kind: output, shape index: {1}]
  %11 = xla_tuple %s9, %s10
  %s12 = sld [smem:[#allocation0]]
  $region54: #{tpu_custom_call.1} parent=0
    _
  %s14 = ssub.s32 1, %s12
  %s15 = scalar_select 0, %s14, %s12
  $region1: #{tpu_custom_call.1} parent=0
    #allocation2 [shape = 'u8[4096]{0}', space=vmem, size = 0x1000, scoped, tag = 'output window, operand 0, single buffered']
    #allocation3 [shape = 's32[1]{0}', space=sflag, size = 0x4, scoped, tag = 'scoped memory for tpu_custom_call.1']
    #allocation4 [shape = 'u8[8192]{0}', space=vmem, size = 0x2000, scoped, tag = 'output window, operand 1, single buffered']
    #allocation5 [shape = 's32[1]{0}', space=sflag, size = 0x4, scoped, tag = 'scoped memory for tpu_custom_call.1']
    %16 = vsyncpa [#allocation3], 0
    %17 = vsyncpa [#allocation5], 0
    // Predicated region
    $region2: #{tpu_custom_call.1} parent=1 // pred_check
      _
    $region3: #{tpu_custom_call.1} parent=1 // pred_check_branch
      %19 = sbr.rel (0) target = $region5
    $region4: #{tpu_custom_call.1} parent=1 // pred_region
      _
    $region5: #{tpu_custom_call.1} parent=1 // pred_fallthru
      _
    // Predicated region
    $region6: #{tpu_custom_call.1} parent=1 // pred_check
      _
    $region7: #{tpu_custom_call.1} parent=1 // pred_check_branch
      %21 = sbr.rel (0) target = $region9
    $region8: #{tpu_custom_call.1} parent=1 // pred_region
      _
    $region9: #{tpu_custom_call.1} parent=1 // pred_fallthru
      _
    // Predicated region
    $region10: #{tpu_custom_call.1} parent=1 // pred_check
      _
    $region11: #{tpu_custom_call.1} parent=1 // pred_check_branch
      %23 = sbr.rel (0) target = $region13
    $region12: #{tpu_custom_call.1} parent=1 // pred_region
      _
    $region13: #{tpu_custom_call.1} parent=1 // pred_fallthru
      _
    // Predicated region
    $region14: #{tpu_custom_call.1} parent=1 // pred_check
      _
    $region15: #{tpu_custom_call.1} parent=1 // pred_check_branch
      %25 = sbr.rel (0) target = $region17
    $region16: #{tpu_custom_call.1} parent=1 // pred_region
      _
    $region17: #{tpu_custom_call.1} parent=1 // pred_fallthru
      _
    // Predicated region
    $region18: #{tpu_custom_call.1} parent=1 // pred_check
      _
    $region19: #{tpu_custom_call.1} parent=1 // pred_check_branch
      %27 = sbr.rel (0) target = $region21
    $region20: #{tpu_custom_call.1} parent=1 // pred_region
      _
    $region21: #{tpu_custom_call.1} parent=1 // pred_fallthru
      _
    // Predicated region
    $region22: #{tpu_custom_call.1} parent=1 // pred_check
      _
    $region23: #{tpu_custom_call.1} parent=1 // pred_check_branch
      %29 = sbr.rel (0) target = $region25
    $region24: #{tpu_custom_call.1} parent=1 // pred_region
      _
    $region25: #{tpu_custom_call.1} parent=1 // pred_fallthru
      _
    // Predicated region
    $region26: #{tpu_custom_call.1} parent=1 // pred_check
      _
    $region27: #{tpu_custom_call.1} parent=1 // pred_check_branch
      %31 = sbr.rel (0) target = $region29
    $region28: #{tpu_custom_call.1} parent=1 // pred_region
      _
    $region29: #{tpu_custom_call.1} parent=1 // pred_fallthru
      _
    // Predicated region
    $region30: #{tpu_custom_call.1} parent=1 // pred_check
      _
    $region31: #{tpu_custom_call.1} parent=1 // pred_check_branch
      %33 = sbr.rel (0) target = $region33
    $region32: #{tpu_custom_call.1} parent=1 // pred_region
      _
    $region33: #{tpu_custom_call.1} parent=1 // pred_fallthru
      _
    // Predicated region
    $region34: #{tpu_custom_call.1} parent=1 // pred_check
      _
    $region35: #{tpu_custom_call.1} parent=1 // pred_check_branch
      %35 = sbr.rel (0) target = $region37
    $region36: #{tpu_custom_call.1} parent=1 // pred_region
      _
    $region37: #{tpu_custom_call.1} parent=1 // pred_fallthru
      _
    %v37 = vld [vmem:[%s8] sm:$0x1]
    %v38 = vld [vmem:[%s8 + $0x1] sm:$0x1]
    %v39 = vld [vmem:[%s8 + $0x2] sm:$0x3]
    %v40 = vld [vmem:[%s8 + $0x4] sm:$0x1]
    %v41 = vld [vmem:[%s8 + $0x5] sm:$0x1]
    %v42 = vld [vmem:[%s8 + $0x6] sm:$0x1]
    %v43 = vld [vmem:[%s0] sm:$0xff]
    %v44 = vpack.c.bf16 %v43, %v43
    %v45 = vld [vmem:[%s2] sm:$0xf]
    %v46 = vld [vmem:[%s2 + $0x4] sm:$0xf]
    %v47 = vld [vmem:[%s2 + $0x8] sm:$0xf]
    %v48 = vld [vmem:[%s2 + $0xc] sm:$0xf]
    %v49 = vld [vmem:[%s2 + $0x10] sm:$0xf]
    %v50 = vld [vmem:[%s2 + $0x14] sm:$0xf]
    %v51 = vld [vmem:[%s2 + $0x18] sm:$0xf]
    %v52 = vld [vmem:[%s2 + $0x1c] sm:$0xf]
    %v54 = vlaneseq
    %v55 = vshrl.u32 %v54, 7
    %v56 = vsub.s32 0, %v55
    %v57 = vrot.slane %v37, %v56
    %v67 = vunpack.c.l.b16 %v45
    %v68 = vunpack.c.l.b16 %v46
    %v69 = vunpack.c.l.b16 %v47
    %v70 = vunpack.c.l.b16 %v48
    %v71 = vunpack.c.l.b16 %v49
    %v72 = vunpack.c.l.b16 %v50
    %v73 = vunpack.c.l.b16 %v51
    %v74 = vunpack.c.l.b16 %v52
    %v75 = vpack.c.b16 %v68, %v67
    %v76 = vpack.c.b16 %v70, %v69
    %v77 = vpack.c.b16 %v72, %v71
    %v78 = vpack.c.b16 %v74, %v73
    %vm83 = vcmask 523264
    %v85 = vsel %vm83, %v44, 0
    %87 = vmatprep.subr.bf16.mxu0 0
    %88 = vmatpush1.bf16.msra.mxu0 %v75
    %89 = vmatprep.subr.bf16.mxu0 0
    %90 = vmatpush1.bf16.msra.mxu0 %v76
    %91 = vmatprep.subr.bf16.mxu0 0
    %92 = vmatpush1.bf16.msra.mxu0 %v77
    %93 = vmatprep.subr.bf16.mxu0 0
    %94 = vmatpush1.bf16.msra.mxu0 %v78
    %95 = vmatprep.subr.bf16.mxu0 0
    %96 = vmatpush1.bf16.msra.mxu0 0
    %97 = vmatprep.subr.bf16.mxu0 0
    %98 = vmatpush1.bf16.msra.mxu0 0
    %99 = vmatprep.subr.bf16.mxu0 0
    %100 = vmatpush1.bf16.msra.mxu0 0
    %101 = vmatprep.subr.bf16.mxu0 0
    %102 = vmatpush1.bf16.msra.mxu0 0
    %103 = vmatprep.subr.bf16.mxu0 0
    %104 = vmatpush1.bf16.msra.mxu0 0
    %105 = vmatprep.subr.bf16.mxu0 0
    %106 = vmatpush1.bf16.msra.mxu0 0
    %107 = vmatprep.subr.bf16.mxu0 0
    %108 = vmatpush1.bf16.msra.mxu0 0
    %109 = vmatprep.subr.bf16.mxu0 0
    %110 = vmatpush1.bf16.msra.mxu0 0
    %111 = vmatprep.subr.bf16.mxu0 0
    %112 = vmatpush1.bf16.msra.mxu0 0
    %113 = vmatprep.subr.bf16.mxu0 0
    %114 = vmatpush1.bf16.msra.mxu0 0
    %115 = vmatprep.subr.bf16.mxu0 0
    %116 = vmatpush1.bf16.msra.mxu0 0
    %117 = vmatprep.subr.bf16.mxu0 0
    %118 = vmatpush1.bf16.msra.mxu0 0
    %119 = vmatprep.mubr.bf16.mxu0 0
    %120 = vmatmul.mubr.bf16.gmra.mrb[0].mxu0 %v85
    %v121 = vpop.f32.mrb[0].mxu0
    %v122 = vadd.f32 %v57, %v121
    %v123 = vpop.f32.mrb[0].mxu0
    %v124 = vpop.f32.mrb[0].mxu0
    %v125 = vpop.f32.mrb[0].mxu0
    %126 = vdwg.mxu0
    %v127 = vmax.f32 %v122, 0.0
    %v128 = vpack.c.bf16 %v127, %v127
    %v129 = vld [vmem:[%s3] sm:$0xf]
    %v130 = vld [vmem:[%s3 + $0x4] sm:$0xf]
    %v131 = vld [vmem:[%s3 + $0x8] sm:$0xf]
    %v132 = vld [vmem:[%s3 + $0xc] sm:$0xf]
    %v134 = vlaneseq
    %v135 = vshrl.u32 %v134, 7
    %v136 = vsub.s32 0, %v135
    %v137 = vrot.slane %v38, %v136
    %v143 = vunpack.c.l.b16 %v129
    %v144 = vunpack.c.l.b16 %v130
    %v145 = vunpack.c.l.b16 %v131
    %v146 = vunpack.c.l.b16 %v132
    %v147 = vpack.c.b16 %v144, %v143
    %v148 = vpack.c.b16 %v146, %v145
    %vm151 = vcmask 261120
    %v153 = vsel %vm151, %v128, 0
    %155 = vmatprep.subr.bf16.mxu0 0
    %156 = vmatpush1.bf16.msra.mxu0 %v147
    %157 = vmatprep.subr.bf16.mxu0 0
    %158 = vmatpush1.bf16.msra.mxu0 %v148
    %159 = vmatprep.subr.bf16.mxu0 0
    %160 = vmatpush1.bf16.msra.mxu0 0
    %161 = vmatprep.subr.bf16.mxu0 0
    %162 = vmatpush1.bf16.msra.mxu0 0
    %163 = vmatprep.subr.bf16.mxu0 0
    %164 = vmatpush1.bf16.msra.mxu0 0
    %165 = vmatprep.subr.bf16.mxu0 0
    %166 = vmatpush1.bf16.msra.mxu0 0
    %167 = vmatprep.subr.bf16.mxu0 0
    %168 = vmatpush1.bf16.msra.mxu0 0
    %169 = vmatprep.subr.bf16.mxu0 0
    %170 = vmatpush1.bf16.msra.mxu0 0
    %171 = vmatprep.subr.bf16.mxu0 0
    %172 = vmatpush1.bf16.msra.mxu0 0
    %173 = vmatprep.subr.bf16.mxu0 0
    %174 = vmatpush1.bf16.msra.mxu0 0
    %175 = vmatprep.subr.bf16.mxu0 0
    %176 = vmatpush1.bf16.msra.mxu0 0
    %177 = vmatprep.subr.bf16.mxu0 0
    %178 = vmatpush1.bf16.msra.mxu0 0
    %179 = vmatprep.subr.bf16.mxu0 0
    %180 = vmatpush1.bf16.msra.mxu0 0
    %181 = vmatprep.subr.bf16.mxu0 0
    %182 = vmatpush1.bf16.msra.mxu0 0
    %183 = vmatprep.subr.bf16.mxu0 0
    %184 = vmatpush1.bf16.msra.mxu0 0
    %185 = vmatprep.subr.bf16.mxu0 0
    %186 = vmatpush1.bf16.msra.mxu0 0
    %187 = vmatprep.mubr.bf16.mxu0 0
    %188 = vmatmul.mubr.bf16.gmra.mrb[0].mxu0 %v153
    %v189 = vpop.f32.mrb[0].mxu0
    %v190 = vadd.f32 %v137, %v189
    %v191 = vpop.f32.mrb[0].mxu0
    %v192 = vpop.f32.mrb[0].mxu0
    %v193 = vpop.f32.mrb[0].mxu0
    %194 = vdwg.mxu0
    %v195 = vmax.f32 %v190, 0.0
    %v196 = vpack.c.bf16 %v195, %v195
    %v197 = vld [vmem:[%s4] sm:$0xff]
    %v198 = vld [vmem:[%s4 + $0x8] sm:$0xff]
    %v200 = vlaneseq
    %v201 = vshrl.u32 %v200, 7
    %v202 = vsub.s32 0, %v201
    %v203 = vrot.slane %v39, %v202
    %v204 = vlaneseq
    %v205 = vshrl.u32 %v204, 7
    %v206 = vsub.s32 1, %v205
    %v207 = vrot.slane %v39, %v206
    %v212 = vunpack.c.l.b16 %v197
    %v213 = vunpack.c.h.b16 %v197
    %v214 = vunpack.c.l.b16 %v198
    %v215 = vunpack.c.h.b16 %v198
    %v216 = vpack.c.b16 %v214, %v212
    %v217 = vpack.c.b16 %v215, %v213
    %vm220 = vcmask 130048
    %v222 = vsel %vm220, %v196, 0
    %224 = vmatprep.subr.bf16.mxu0 %v217
    %225 = vmatpush1.bf16.msra.mxu0 %v216
    %226 = vmatprep.subr.bf16.mxu0 0
    %227 = vmatpush1.bf16.msra.mxu0 0
    %228 = vmatprep.subr.bf16.mxu0 0
    %229 = vmatpush1.bf16.msra.mxu0 0
    %230 = vmatprep.subr.bf16.mxu0 0
    %231 = vmatpush1.bf16.msra.mxu0 0
    %232 = vmatprep.subr.bf16.mxu0 0
    %233 = vmatpush1.bf16.msra.mxu0 0
    %234 = vmatprep.subr.bf16.mxu0 0
    %235 = vmatpush1.bf16.msra.mxu0 0
    %236 = vmatprep.subr.bf16.mxu0 0
    %237 = vmatpush1.bf16.msra.mxu0 0
    %238 = vmatprep.subr.bf16.mxu0 0
    %239 = vmatpush1.bf16.msra.mxu0 0
    %240 = vmatprep.subr.bf16.mxu0 0
    %241 = vmatpush1.bf16.msra.mxu0 0
    %242 = vmatprep.subr.bf16.mxu0 0
    %243 = vmatpush1.bf16.msra.mxu0 0
    %244 = vmatprep.subr.bf16.mxu0 0
    %245 = vmatpush1.bf16.msra.mxu0 0
    %246 = vmatprep.subr.bf16.mxu0 0
    %247 = vmatpush1.bf16.msra.mxu0 0
    %248 = vmatprep.subr.bf16.mxu0 0
    %249 = vmatpush1.bf16.msra.mxu0 0
    %250 = vmatprep.subr.bf16.mxu0 0
    %251 = vmatpush1.bf16.msra.mxu0 0
    %252 = vmatprep.subr.bf16.mxu0 0
    %253 = vmatpush1.bf16.msra.mxu0 0
    %254 = vmatprep.subr.bf16.mxu0 0
    %255 = vmatpush1.bf16.msra.mxu0 0
    %256 = vmatprep.mubr.bf16.mxu0 0
    %257 = vmatmul.mubr.bf16.gmra.mrb[0].mxu0 %v222
    %v258 = vpop.f32.mrb[0].mxu0
    %v259 = vadd.f32 %v203, %v258
    %v260 = vpop.f32.mrb[0].mxu0
    %v261 = vadd.f32 %v207, %v260
    %v262 = vpop.f32.mrb[0].mxu0
    %v263 = vpop.f32.mrb[0].mxu0
    %264 = vdwg.mxu0
    %v265 = vmul.f32 %v261, 0.5
    %v266 = vmul.f32 %v265, 1.442695
    %v267 = vpow.pop %v266
    %v268 = vld [vmem:[%s1] sm:$0xff]
    %v269 = vmul.f32 %v267, %v268
    %v270 = vadd.f32 %v259, %v269
    %v271 = vpack.c.bf16 %v270, %v270
    %v272 = vld [vmem:[%s5] sm:$0xf]
    %v273 = vld [vmem:[%s5 + $0x4] sm:$0xf]
    %v274 = vld [vmem:[%s5 + $0x8] sm:$0xf]
    %v275 = vld [vmem:[%s5 + $0xc] sm:$0xf]
    %v276 = vld [vmem:[%s5 + $0x10] sm:$0xf]
    %v277 = vld [vmem:[%s5 + $0x14] sm:$0xf]
    %v278 = vld [vmem:[%s5 + $0x18] sm:$0xf]
    %v279 = vld [vmem:[%s5 + $0x1c] sm:$0xf]
    %v280 = vld [vmem:[%s5 + $0x20] sm:$0xf]
    %v281 = vld [vmem:[%s5 + $0x24] sm:$0xf]
    %v282 = vld [vmem:[%s5 + $0x28] sm:$0xf]
    %v283 = vld [vmem:[%s5 + $0x2c] sm:$0xf]
    %v284 = vld [vmem:[%s5 + $0x30] sm:$0xf]
    %v285 = vld [vmem:[%s5 + $0x34] sm:$0xf]
    %v286 = vld [vmem:[%s5 + $0x38] sm:$0xf]
    %v287 = vld [vmem:[%s5 + $0x3c] sm:$0xf]
    %v289 = vlaneseq
    %v290 = vshrl.u32 %v289, 7
    %v291 = vsub.s32 0, %v290
    %v292 = vrot.slane %v40, %v291
    %v310 = vunpack.c.l.b16 %v272
    %v311 = vunpack.c.l.b16 %v273
    %v312 = vunpack.c.l.b16 %v274
    %v313 = vunpack.c.l.b16 %v275
    %v314 = vunpack.c.l.b16 %v276
    %v315 = vunpack.c.l.b16 %v277
    %v316 = vunpack.c.l.b16 %v278
    %v317 = vunpack.c.l.b16 %v279
    %v318 = vunpack.c.l.b16 %v280
    %v319 = vunpack.c.l.b16 %v281
    %v320 = vunpack.c.l.b16 %v282
    %v321 = vunpack.c.l.b16 %v283
    %v322 = vunpack.c.l.b16 %v284
    %v323 = vunpack.c.l.b16 %v285
    %v324 = vunpack.c.l.b16 %v286
    %v325 = vunpack.c.l.b16 %v287
    %v326 = vpack.c.b16 %v311, %v310
    %v327 = vpack.c.b16 %v313, %v312
    %v328 = vpack.c.b16 %v315, %v314
    %v329 = vpack.c.b16 %v317, %v316
    %v330 = vpack.c.b16 %v319, %v318
    %v331 = vpack.c.b16 %v321, %v320
    %v332 = vpack.c.b16 %v323, %v322
    %v333 = vpack.c.b16 %v325, %v324
    %342 = vmatprep.subr.bf16.mxu0 0
    %343 = vmatpush1.bf16.msra.mxu0 %v326
    %344 = vmatprep.subr.bf16.mxu0 0
    %345 = vmatpush1.bf16.msra.mxu0 %v327
    %346 = vmatprep.subr.bf16.mxu0 0
    %347 = vmatpush1.bf16.msra.mxu0 %v328
    %348 = vmatprep.subr.bf16.mxu0 0
    %349 = vmatpush1.bf16.msra.mxu0 %v329
    %350 = vmatprep.subr.bf16.mxu0 0
    %351 = vmatpush1.bf16.msra.mxu0 %v330
    %352 = vmatprep.subr.bf16.mxu0 0
    %353 = vmatpush1.bf16.msra.mxu0 %v331
    %354 = vmatprep.subr.bf16.mxu0 0
    %355 = vmatpush1.bf16.msra.mxu0 %v332
    %356 = vmatprep.subr.bf16.mxu0 0
    %357 = vmatpush1.bf16.msra.mxu0 %v333
    %358 = vmatprep.subr.bf16.mxu0 0
    %359 = vmatpush1.bf16.msra.mxu0 0
    %360 = vmatprep.subr.bf16.mxu0 0
    %361 = vmatpush1.bf16.msra.mxu0 0
    %362 = vmatprep.subr.bf16.mxu0 0
    %363 = vmatpush1.bf16.msra.mxu0 0
    %364 = vmatprep.subr.bf16.mxu0 0
    %365 = vmatpush1.bf16.msra.mxu0 0
    %366 = vmatprep.subr.bf16.mxu0 0
    %367 = vmatpush1.bf16.msra.mxu0 0
    %368 = vmatprep.subr.bf16.mxu0 0
    %369 = vmatpush1.bf16.msra.mxu0 0
    %370 = vmatprep.subr.bf16.mxu0 0
    %371 = vmatpush1.bf16.msra.mxu0 0
    %372 = vmatprep.subr.bf16.mxu0 0
    %373 = vmatpush1.bf16.msra.mxu0 0
    %374 = vmatprep.mubr.bf16.mxu0 0
    %375 = vmatmul.mubr.bf16.gmra.mrb[0].mxu0 %v271
    %v376 = vpop.f32.mrb[0].mxu0
    %v377 = vadd.f32 %v292, %v376
    %v378 = vpop.f32.mrb[0].mxu0
    %v379 = vpop.f32.mrb[0].mxu0
    %v380 = vpop.f32.mrb[0].mxu0
    %381 = vdwg.mxu0
    %v382 = vmax.f32 %v377, 0.0
    %v383 = vpack.c.bf16 %v382, %v382
    %v384 = vld [vmem:[%s6] sm:$0xf]
    %v385 = vld [vmem:[%s6 + $0x4] sm:$0xf]
    %v387 = vlaneseq
    %v388 = vshrl.u32 %v387, 7
    %v389 = vsub.s32 0, %v388
    %v390 = vrot.slane %v41, %v389
    %v394 = vunpack.c.l.b16 %v384
    %v395 = vunpack.c.l.b16 %v385
    %v396 = vpack.c.b16 %v395, %v394
    %v399 = vsel %vm220, %v383, 0
    %401 = vmatprep.subr.bf16.mxu0 0
    %402 = vmatpush1.bf16.msra.mxu0 %v396
    %403 = vmatprep.subr.bf16.mxu0 0
    %404 = vmatpush1.bf16.msra.mxu0 0
    %405 = vmatprep.subr.bf16.mxu0 0
    %406 = vmatpush1.bf16.msra.mxu0 0
    %407 = vmatprep.subr.bf16.mxu0 0
    %408 = vmatpush1.bf16.msra.mxu0 0
    %409 = vmatprep.subr.bf16.mxu0 0
    %410 = vmatpush1.bf16.msra.mxu0 0
    %411 = vmatprep.subr.bf16.mxu0 0
    %412 = vmatpush1.bf16.msra.mxu0 0
    %413 = vmatprep.subr.bf16.mxu0 0
    %414 = vmatpush1.bf16.msra.mxu0 0
    %415 = vmatprep.subr.bf16.mxu0 0
    %416 = vmatpush1.bf16.msra.mxu0 0
    %417 = vmatprep.subr.bf16.mxu0 0
    %418 = vmatpush1.bf16.msra.mxu0 0
    %419 = vmatprep.subr.bf16.mxu0 0
    %420 = vmatpush1.bf16.msra.mxu0 0
    %421 = vmatprep.subr.bf16.mxu0 0
    %422 = vmatpush1.bf16.msra.mxu0 0
    %423 = vmatprep.subr.bf16.mxu0 0
    %424 = vmatpush1.bf16.msra.mxu0 0
    %425 = vmatprep.subr.bf16.mxu0 0
    %426 = vmatpush1.bf16.msra.mxu0 0
    %427 = vmatprep.subr.bf16.mxu0 0
    %428 = vmatpush1.bf16.msra.mxu0 0
    %429 = vmatprep.subr.bf16.mxu0 0
    %430 = vmatpush1.bf16.msra.mxu0 0
    %431 = vmatprep.subr.bf16.mxu0 0
    %432 = vmatpush1.bf16.msra.mxu0 0
    %433 = vmatprep.mubr.bf16.mxu0 0
    %434 = vmatmul.mubr.bf16.gmra.mrb[0].mxu0 %v399
    %v435 = vpop.f32.mrb[0].mxu0
    %v436 = vadd.f32 %v390, %v435
    %v437 = vpop.f32.mrb[0].mxu0
    %v438 = vpop.f32.mrb[0].mxu0
    %v439 = vpop.f32.mrb[0].mxu0
    %440 = vdwg.mxu0
    %v441 = vmax.f32 %v436, 0.0
    %v442 = vpack.c.bf16 %v441, %v441
    %v443 = vld [vmem:[%s7] sm:$0xf]
    %v444 = vld [vmem:[%s7 + $0x4] sm:$0xf]
    %v445 = vld [vmem:[%s7 + $0x8] sm:$0xf]
    %v446 = vld [vmem:[%s7 + $0xc] sm:$0xf]
    %v448 = vlaneseq
    %v449 = vshrl.u32 %v448, 7
    %v450 = vsub.s32 0, %v449
    %v451 = vrot.slane %v42, %v450
    %v457 = vunpack.c.l.b16 %v443
    %v458 = vunpack.c.l.b16 %v444
    %v459 = vunpack.c.l.b16 %v445
    %v460 = vunpack.c.l.b16 %v446
    %v461 = vpack.c.b16 %v458, %v457
    %v462 = vpack.c.b16 %v460, %v459
    %v466 = vsel %vm151, %v442, 0
    %468 = vmatprep.subr.bf16.mxu0 0
    %469 = vmatpush1.bf16.msra.mxu0 %v461
    %470 = vmatprep.subr.bf16.mxu0 0
    %471 = vmatpush1.bf16.msra.mxu0 %v462
    %472 = vmatprep.subr.bf16.mxu0 0
    %473 = vmatpush1.bf16.msra.mxu0 0
    %474 = vmatprep.subr.bf16.mxu0 0
    %475 = vmatpush1.bf16.msra.mxu0 0
    %476 = vmatprep.subr.bf16.mxu0 0
    %477 = vmatpush1.bf16.msra.mxu0 0
    %478 = vmatprep.subr.bf16.mxu0 0
    %479 = vmatpush1.bf16.msra.mxu0 0
    %480 = vmatprep.subr.bf16.mxu0 0
    %481 = vmatpush1.bf16.msra.mxu0 0
    %482 = vmatprep.subr.bf16.mxu0 0
    %483 = vmatpush1.bf16.msra.mxu0 0
    %484 = vmatprep.subr.bf16.mxu0 0
    %485 = vmatpush1.bf16.msra.mxu0 0
    %486 = vmatprep.subr.bf16.mxu0 0
    %487 = vmatpush1.bf16.msra.mxu0 0
    %488 = vmatprep.subr.bf16.mxu0 0
    %489 = vmatpush1.bf16.msra.mxu0 0
    %490 = vmatprep.subr.bf16.mxu0 0
    %491 = vmatpush1.bf16.msra.mxu0 0
    %492 = vmatprep.subr.bf16.mxu0 0
    %493 = vmatpush1.bf16.msra.mxu0 0
    %494 = vmatprep.subr.bf16.mxu0 0
    %495 = vmatpush1.bf16.msra.mxu0 0
    %496 = vmatprep.subr.bf16.mxu0 0
    %497 = vmatpush1.bf16.msra.mxu0 0
    %498 = vmatprep.subr.bf16.mxu0 0
    %499 = vmatpush1.bf16.msra.mxu0 0
    %500 = vmatprep.mubr.bf16.mxu0 0
    %501 = vmatmul.mubr.bf16.gmra.mrb[0].mxu0 %v466
    %v502 = vpop.f32.mrb[0].mxu0
    %v503 = vadd.f32 %v451, %v502
    %v504 = vpop.f32.mrb[0].mxu0
    %v505 = vpop.f32.mrb[0].mxu0
    %v506 = vpop.f32.mrb[0].mxu0
    %507 = vdwg.mxu0
    %v508 = vxor.u32 %v503, 2147483648
    %v509 = vmul.f32 %v508, 1.442695
    %v510 = vpow.pop %v509
    %v511 = vadd.f32 %v510, 1.0
    %v512 = vrcp.pop %v511
    %v513 = vmul.f32 1.0, %v512
    %514 = vst [vmem:[#allocation2] sm:$0xff] %v513
    %515 = vst [vmem:[#allocation4] sm:$0xff] %v259
    %516 = vst [vmem:[#allocation4 + $0x8] sm:$0xff] %v261
    // Predicated region
    $region38: #{tpu_custom_call.1} parent=1 // pred_check
      _
    $region39: #{tpu_custom_call.1} parent=1 // pred_check_branch
      %518 = sbr.rel (0) target = $region41
    $region40: #{tpu_custom_call.1} parent=1 // pred_region
      %s520 = ssub.s32 128, 128
      %521 = vsyncadd [#allocation3], %s520
      %s523 = sshll.u32 [#allocation2], 4
      %s524 = int_to_ptr.vmem [resolvable:$true] %s523
      %526 = dma.vmem_to_hbm [thread:$0]  %s524, 128, %s9, [#allocation3]
    $region41: #{tpu_custom_call.1} parent=1 // pred_fallthru
      _
    // Predicated region
    $region42: #{tpu_custom_call.1} parent=1 // pred_check
      _
    $region43: #{tpu_custom_call.1} parent=1 // pred_check_branch
      %528 = sbr.rel (0) target = $region45
    $region44: #{tpu_custom_call.1} parent=1 // pred_region
      %s530 = ssub.s32 256, 256
      %531 = vsyncadd [#allocation5], %s530
      %s533 = sshll.u32 [#allocation4], 4
      %s534 = int_to_ptr.vmem [resolvable:$true] %s533
      %536 = dma.vmem_to_hbm [thread:$0]  %s534, 256, %s10, [#allocation5]
    $region45: #{tpu_custom_call.1} parent=1 // pred_fallthru
      _
    // Predicated region
    $region46: #{tpu_custom_call.1} parent=1 // pred_check
      _
    $region47: #{tpu_custom_call.1} parent=1 // pred_check_branch
      %538 = sbr.rel (0) target = $region49
    $region48: #{tpu_custom_call.1} parent=1 // pred_region
      %539 = dma.done [#allocation3], 128
    $region49: #{tpu_custom_call.1} parent=1 // pred_fallthru
      _
    // Predicated region
    $region50: #{tpu_custom_call.1} parent=1 // pred_check
      _
    $region51: #{tpu_custom_call.1} parent=1 // pred_check_branch
      %541 = sbr.rel (0) target = $region53
    $region52: #{tpu_custom_call.1} parent=1 // pred_region
      %542 = dma.done [#allocation5], 256
    $region53: #{tpu_custom_call.1} parent=1 // pred_fallthru
      _
    %543 = vsyncpa [#allocation3], 1
    %544 = vsyncpa [#allocation5], 1

</llo_original>
